<compile_context>
chip_gen: v7x
topology: tpu7x:2x2x1
jax: 0.10.0
libtpu: 0.0.40
codegen_flags: <defaults>
</compile_context>

<pallas_src>
import math

import jax
import jax.numpy as jnp
import numpy as np
from jax.experimental import pallas as pl
from jax.experimental.pallas import tpu as pltpu

NEG_SLOPE = 0.01  # torch.nn.LeakyReLU default


def _leaky(v):
    # For 0 < slope < 1, LeakyReLU(v) == max(v, slope*v): 2 VPU ops.
    return jnp.maximum(v, NEG_SLOPE * v)


def _round_up(n, m=128):
    return ((n + m - 1) // m) * m


# ---------------------------------------------------------------------------
# Parameter preparation: fold convs + pools into dense (lane-padded) matrices.
# ---------------------------------------------------------------------------
def _toeplitz_conv1d(w, l_in):
    """Conv1d weight (C_out, C_in, W) -> (C_in*l_in, C_out*l_out) matrix."""
    c_out, c_in, width = w.shape
    l_out = l_in - width + 1
    t = np.arange(l_out)
    mat = np.zeros((c_in * l_in, c_out * l_out), np.float32)
    for co in range(c_out):
        for ci in range(c_in):
            for k in range(width):
                mat[ci * l_in + t + k, co * l_out + t] = w[co, ci, k]
    return mat, l_out


def _avgpool2_matrix(l_in):
    l_out = l_in // 2
    mat = np.zeros((l_in, l_out), np.float32)
    j = np.arange(l_out)
    mat[2 * j, j] = 0.5
    mat[2 * j + 1, j] = 0.5
    return mat, l_out


def _adaptive_avgpool_matrix(l_in, l_out):
    mat = np.zeros((l_in, l_out), np.float32)
    for j in range(l_out):
        s = (j * l_in) // l_out
        e = -((-(j + 1) * l_in) // l_out)  # ceil
        mat[s:e, j] = 1.0 / (e - s)
    return mat


def _block_diag(mat, n):
    r, c = mat.shape
    out = np.zeros((n * r, n * c), np.float32)
    for i in range(n):
        out[i * r:(i + 1) * r, i * c:(i + 1) * c] = mat
    return out


def _pad2(mat, rows, cols):
    out = np.zeros((rows, cols), np.float32)
    out[:mat.shape[0], :mat.shape[1]] = mat
    return out


def prepare_fused_params(params, nx, compute_dtype=jnp.bfloat16):
    """Fold conv/pool/bias params into padded dense matrices.

    compute_dtype is the MXU input dtype (weights + activations); biases and
    accumulation stay f32.
    """
    w1 = np.asarray(params["w1"], np.float32)
    w2 = np.asarray(params["w2"], np.float32)
    w3 = np.asarray(params["w3"], np.float32)
    b1 = np.asarray(params["b1"], np.float32)
    b2 = np.asarray(params["b2"], np.float32)
    b3 = np.asarray(params["b3"], np.float32)

    l0 = nx
    t1, l1 = _toeplitz_conv1d(w1, l0)                    # (2*l0, 5*l1)
    p_avg, l2 = _avgpool2_matrix(l1)
    t2, l3 = _toeplitz_conv1d(w2, l2)                    # (5*l2, 5*l3)
    p_ad = _adaptive_avgpool_matrix(l3, 16)
    t3, l4 = _toeplitz_conv1d(w3, 16)                    # (5*16, l4)

    c_mid1 = w1.shape[0]  # 5
    c_mid2 = w2.shape[0]  # 5

    a1 = t1                                              # (2*l0, c_mid1*l1)
    a2 = _block_diag(p_avg, c_mid1) @ t2                 # (c_mid1*l1, c_mid2*l3)
    a3 = _block_diag(p_ad, c_mid2) @ t3                  # (c_mid2*l3, l4)

    d1 = _round_up(c_mid1 * l1)
    d2 = _round_up(c_mid2 * l3)
    d3 = _round_up(l4)

    c1 = np.zeros((1, d1), np.float32)
    c1[0, :c_mid1 * l1] = np.repeat(b1, l1)
    c2 = np.zeros((1, d2), np.float32)
    c2[0, :c_mid2 * l3] = np.repeat(b2, l3)
    c3 = np.zeros((1, d3), np.float32)
    c3[0, :l4] = np.repeat(b3, l4)

    return {
        "a1": jnp.asarray(_pad2(a1, 2 * l0, d1), dtype=compute_dtype),
        "c1": jnp.asarray(c1),
        "a2": jnp.asarray(_pad2(a2, d1, d2), dtype=compute_dtype),
        "c2": jnp.asarray(c2),
        "a3": jnp.asarray(_pad2(a3, d2, d3), dtype=compute_dtype),
        "c3": jnp.asarray(c3),
        "l4": int(l4),
    }


# ---------------------------------------------------------------------------
# Pallas kernel
# ---------------------------------------------------------------------------
def _build_kernel(inv_l4):
    def kernel(xy_ref, a1_ref, c1_ref, a2_ref, c2_ref, a3_ref, c3_ref, o_ref):
        wdt = a1_ref.dtype  # MXU input dtype (f32 or bf16); accumulate in f32.

        # Layer 1: conv1 on cat((x, y)) as one K=2*L0 MXU matmul.
        h = jnp.dot(xy_ref[...], a1_ref[...],
                    preferred_element_type=jnp.float32)
        h = _leaky(h + c1_ref[...])

        # Layer 2: AvgPool1d(2) + conv2 fused into one matrix.
        h = jnp.dot(h.astype(wdt), a2_ref[...],
                    preferred_element_type=jnp.float32)
        h = _leaky(h + c2_ref[...])

        # Layer 3: AdaptiveAvgPool1d(16) + conv3 fused into one matrix.
        h = jnp.dot(h.astype(wdt), a3_ref[...],
                    preferred_element_type=jnp.float32)
        h = _leaky(h + c3_ref[...])

        # AdaptiveAvgPool1d(1): padded lanes are exactly zero (LeakyReLU(0)=0),
        # so the full-lane sum equals the sum over the L4 real positions.
        s = jnp.sum(h, axis=-1, keepdims=True) * inv_l4

        # Sigmoid: exp on the EUP, approximate reciprocal on the EUP free slot.
        o_ref[...] = pl.reciprocal(1.0 + jnp.exp(-s),
                                   approx=True).astype(o_ref.dtype)

    return kernel


_TB_LADDER = (1024, 512, 256, 128, 64, 32, 16, 8)


def _pick_tb(batch, min_steps=4):
    """Largest batch tile that still leaves >= min_steps grid steps.

    >= min_steps (=4) steps gives the v7x megacore >=2 steps per TensorCore so
    step i+1's input DMA hides under step i's compute; for small batches the
    per-step ~0.35us fixed cost dominates, so take the fewest steps instead.
    """
    divisors = [tb for tb in _TB_LADDER if batch % tb == 0]
    if not divisors:
        return batch                      # ragged batch: single full block
    if batch >= 128 * min_steps:
        for tb in divisors:               # descending
            if batch // tb >= min_steps:
                return tb
    return divisors[0]


def conditional_discriminator_conv(x, y, fused):
    """x, y: (B, 1, Nx).  Returns (B, 1, 1) float32."""
    batch, _, l0 = x.shape
    a1, a2, a3 = fused["a1"], fused["a2"], fused["a3"]
    c1, c2, c3 = fused["c1"], fused["c2"], fused["c3"]
    cdt = a1.dtype
    d1, d2, d3 = a1.shape[1], a2.shape[1], a3.shape[1]
    k1 = a1.shape[0]  # 2 * l0

    # Single lane-dense LHS for layer 1: [x | y] -> (B, 2*L0).
    xy = jnp.concatenate([x.reshape(batch, l0), y.reshape(batch, l0)],
                         axis=1).astype(cdt)

    tb = _pick_tb(batch)
    grid = (batch // tb,)

    def _const(shape):
        # Constant block index -> weights/biases stay VMEM-resident across the
        # batch grid (no re-DMA per step).
        return pl.BlockSpec(shape, lambda i: (0, 0))

    in_specs = [
        pl.BlockSpec((tb, k1), lambda i: (i, 0)),   # xy
        _const((k1, d1)),                           # a1
        _const((1, d1)),                            # c1
        _const((d1, d2)),                           # a2
        _const((1, d2)),                            # c2
        _const((d2, d3)),                           # a3
        _const((1, d3)),                            # c3
    ]
    # Output is tb x 4 bytes per step; lane-sparse store is negligible here.
    out_specs = pl.BlockSpec((tb, 1), lambda i: (i, 0))

    # VMEM budget: resident weights (Pallas may still double-buffer them) +
    # double-buffered xy/out tiles + f32 intermediates, with 2x headroom.
    w_bytes = ((a1.size + a2.size + a3.size) * a1.dtype.itemsize
               + 4 * (c1.size + c2.size + c3.size))
    io_bytes = 2 * (tb * k1 * xy.dtype.itemsize + tb * 4)
    interm_bytes = 4 * tb * (d1 + d2 + d3)
    need = 2 * w_bytes + io_bytes + 3 * interm_bytes
    vmem_limit = int(min(max(2 * need, 16 * 2 ** 20), 48 * 2 ** 20))
    # TODO(synk): for Nx >~ 512, A2 is O(Nx^2); tile d1 via an extra
    # "arbitrary" reduction grid axis instead of keeping all weights resident.

    flops = 2 * batch * (k1 * d1 + d1 * d2 + d2 * d3)
    bytes_accessed = (xy.size * xy.dtype.itemsize + batch * 4 + w_bytes)
    cost = pl.CostEstimate(flops=flops, transcendentals=2 * batch,
                           bytes_accessed=bytes_accessed)

    out2 = pl.pallas_call(
        _build_kernel(1.0 / float(fused["l4"])),
        out_shape=jax.ShapeDtypeStruct((batch, 1), jnp.float32),
        grid=grid,
        in_specs=in_specs,
        out_specs=out_specs,
        compiler_params=pltpu.CompilerParams(
            dimension_semantics=("parallel",),
            vmem_limit_bytes=vmem_limit),
        cost_estimate=cost,
    )(xy, a1, c1, a2, c2, a3, c3)

    return out2.reshape(batch, 1, 1)


# ---------------------------------------------------------------------------
# Reference (direct translation of the PyTorch forward, plain JAX)
# ---------------------------------------------------------------------------
def _leaky_ref(v):
    return jnp.where(v > 0, v, NEG_SLOPE * v)


def _conv1d_ref(x, w, b):
    width = w.shape[-1]
    l_out = x.shape[-1] - width + 1
    out = jnp.zeros((x.shape[0], w.shape[0], l_out), x.dtype)
    for k in range(width):
        out = out + jnp.einsum("bcl,oc->bol", x[:, :, k:k + l_out], w[:, :, k])
    return out + b[None, :, None]


def _avgpool2_ref(x):
    l_out = x.shape[-1] // 2
    x = x[..., :2 * l_out]
    return 0.5 * (x[..., 0::2] + x[..., 1::2])


def _adaptive_avgpool_ref(x, out_size):
    l_in = x.shape[-1]
    cols = []
    for j in range(out_size):
        s = (j * l_in) // out_size
        e = -((-(j + 1) * l_in) // out_size)
        cols.append(jnp.mean(x[..., s:e], axis=-1, keepdims=True))
    return jnp.concatenate(cols, axis=-1)


def reference(x, y, params):
    h = jnp.concatenate([x, y], axis=1)                       # (B, 2, L0)
    h = _leaky_ref(_conv1d_ref(h, params["w1"], params["b1"]))
    h = _avgpool2_ref(h)
    h = _leaky_ref(_conv1d_ref(h, params["w2"], params["b2"]))
    h = _adaptive_avgpool_ref(h, 16)
    h = _leaky_ref(_conv1d_ref(h, params["w3"], params["b3"]))
    h = _adaptive_avgpool_ref(h, 1)
    return 1.0 / (1.0 + jnp.exp(-h))                          # Sigmoid, (B,1,1)


# ---------------------------------------------------------------------------
# Init mirroring torch Conv1d's default U(-1/sqrt(fan_in), +1/sqrt(fan_in))
# ---------------------------------------------------------------------------
def init_params(key, width):
    shapes = [(5, 2, width), (5, 5, width), (1, 5, width)]
    params = {}
    keys = jax.random.split(key, 2 * len(shapes))
    for i, (c_out, c_in, kw) in enumerate(shapes):
        bound = 1.0 / math.sqrt(c_in * kw)
        params[f"w{i + 1}"] = jax.random.uniform(
            keys[2 * i], (c_out, c_in, kw), minval=-bound, maxval=bound,
            dtype=jnp.float32)
        params[f"b{i + 1}"] = jax.random.uniform(
            keys[2 * i + 1], (c_out,), minval=-bound, maxval=bound,
            dtype=jnp.float32)
    return params


if __name__ == "__main__":
    Nx = 64       # signal length
    width = 5     # conv kernel width
    B = 512       # -> tb=128, 4 "parallel" grid steps (>=2 per v7x core)

    key = jax.random.PRNGKey(0)
    k_x, k_y, k_p = jax.random.split(key, 3)
    x = jax.random.normal(k_x, (B, 1, Nx), dtype=jnp.float32)
    y = jax.random.normal(k_y, (B, 1, Nx), dtype=jnp.float32)
    params = init_params(k_p, width)

    ref = reference(x, y, params)

    # f32 path: tight check against the plain-JAX reference.
    fused_f32 = prepare_fused_params(params, Nx, compute_dtype=jnp.float32)
    out_f32 = jax.block_until_ready(conditional_discriminator_conv(x, y, fused_f32))
    assert out_f32.shape == (B, 1, 1), out_f32.shape
    err_f32 = float(jnp.max(jnp.abs(out_f32 - ref)))
    assert err_f32 < 2e-3, err_f32        # slack for approx-EUP reciprocal

    # bf16 path: MXU-native weights/activations, f32 accumulate (default perf path).
    fused_bf16 = prepare_fused_params(params, Nx, compute_dtype=jnp.bfloat16)
    out_bf16 = jax.block_until_ready(conditional_discriminator_conv(x, y, fused_bf16))
    assert out_bf16.shape == (B, 1, 1), out_bf16.shape
    err_bf16 = float(jnp.max(jnp.abs(out_bf16 - ref)))
    assert err_bf16 < 2e-2, err_bf16

    print("KERNEL_OK")
</pallas_src>

<mosaic_0001>
module attributes {stable_mosaic.version = 11 : i64} {
  func.func @kernel(%arg0: i32, %arg1: memref<128x128xf32, #tpu.memory_space<vmem>>, %arg2: memref<128x384xf32, #tpu.memory_space<vmem>>, %arg3: memref<1x384xf32, #tpu.memory_space<vmem>>, %arg4: memref<384x256xf32, #tpu.memory_space<vmem>>, %arg5: memref<1x256xf32, #tpu.memory_space<vmem>>, %arg6: memref<256x128xf32, #tpu.memory_space<vmem>>, %arg7: memref<1x128xf32, #tpu.memory_space<vmem>>, %arg8: memref<128x1xf32, #tpu.memory_space<vmem>>) attributes {dimension_semantics = [#tpu.dimension_semantics<parallel>], iteration_bounds = array<i64: 4>, scalar_prefetch = 0 : i64, scratch_operands = 0 : i64, tpu.core_type = #tpu.core_type<tc>, window_params = [{transform_indices = @transform_0, window_bounds = array<i64: 128, 128>}, {pipeline_mode = #tpu.pipeline_mode<synchronous>, transform_indices = @transform_1, window_bounds = array<i64: 128, 384>}, {pipeline_mode = #tpu.pipeline_mode<synchronous>, transform_indices = @transform_2, window_bounds = array<i64: 1, 384>}, {pipeline_mode = #tpu.pipeline_mode<synchronous>, transform_indices = @transform_3, window_bounds = array<i64: 384, 256>}, {pipeline_mode = #tpu.pipeline_mode<synchronous>, transform_indices = @transform_4, window_bounds = array<i64: 1, 256>}, {pipeline_mode = #tpu.pipeline_mode<synchronous>, transform_indices = @transform_5, window_bounds = array<i64: 256, 128>}, {pipeline_mode = #tpu.pipeline_mode<synchronous>, transform_indices = @transform_6, window_bounds = array<i64: 1, 128>}, {transform_indices = @transform_7, window_bounds = array<i64: 128, 1>}]} {
    %c0 = arith.constant 0 : index
    %c0_0 = arith.constant 0 : index
    %0 = vector.load %arg1[%c0, %c0_0] : memref<128x128xf32, #tpu.memory_space<vmem>>, vector<128x128xf32>
    %c0_1 = arith.constant 0 : index
    %c0_2 = arith.constant 0 : index
    %1 = vector.load %arg2[%c0_1, %c0_2] : memref<128x384xf32, #tpu.memory_space<vmem>>, vector<128x384xf32>
    %cst = arith.constant dense<0.000000e+00> : vector<128x384xf32>
    %2 = tpu.matmul %0, %1, %cst {dimension_numbers = #tpu.dot_dimension_numbers<[1], [0], [0], [1], [0, 0, 1, 1], [], []>} : vector<128x128xf32>, vector<128x384xf32>, vector<128x384xf32> -> vector<128x384xf32>
    %c0_3 = arith.constant 0 : index
    %c0_4 = arith.constant 0 : index
    %3 = vector.load %arg3[%c0_3, %c0_4] : memref<1x384xf32, #tpu.memory_space<vmem>>, vector<1x384xf32>
    %4 = vector.broadcast %3 : vector<1x384xf32> to vector<128x384xf32>
    %5 = arith.addf %2, %4 : vector<128x384xf32>
    %cst_5 = arith.constant 0.00999999977 : f32
    %6 = vector.broadcast %cst_5 : f32 to vector<128x384xf32>
    %7 = arith.mulf %6, %5 : vector<128x384xf32>
    %8 = arith.maximumf %5, %7 : vector<128x384xf32>
    %c0_6 = arith.constant 0 : index
    %c0_7 = arith.constant 0 : index
    %9 = vector.load %arg4[%c0_6, %c0_7] : memref<384x256xf32, #tpu.memory_space<vmem>>, vector<384x256xf32>
    %cst_8 = arith.constant dense<0.000000e+00> : vector<128x256xf32>
    %10 = tpu.matmul %8, %9, %cst_8 {dimension_numbers = #tpu.dot_dimension_numbers<[1], [0], [0], [1], [0, 0, 1, 1], [], []>} : vector<128x384xf32>, vector<384x256xf32>, vector<128x256xf32> -> vector<128x256xf32>
    %c0_9 = arith.constant 0 : index
    %c0_10 = arith.constant 0 : index
    %11 = vector.load %arg5[%c0_9, %c0_10] : memref<1x256xf32, #tpu.memory_space<vmem>>, vector<1x256xf32>
    %12 = vector.broadcast %11 : vector<1x256xf32> to vector<128x256xf32>
    %13 = arith.addf %10, %12 : vector<128x256xf32>
    %cst_11 = arith.constant 0.00999999977 : f32
    %14 = vector.broadcast %cst_11 : f32 to vector<128x256xf32>
    %15 = arith.mulf %14, %13 : vector<128x256xf32>
    %16 = arith.maximumf %13, %15 : vector<128x256xf32>
    %c0_12 = arith.constant 0 : index
    %c0_13 = arith.constant 0 : index
    %17 = vector.load %arg6[%c0_12, %c0_13] : memref<256x128xf32, #tpu.memory_space<vmem>>, vector<256x128xf32>
    %cst_14 = arith.constant dense<0.000000e+00> : vector<128x128xf32>
    %18 = tpu.matmul %16, %17, %cst_14 {dimension_numbers = #tpu.dot_dimension_numbers<[1], [0], [0], [1], [0, 0, 1, 1], [], []>} : vector<128x256xf32>, vector<256x128xf32>, vector<128x128xf32> -> vector<128x128xf32>
    %c0_15 = arith.constant 0 : index
    %c0_16 = arith.constant 0 : index
    %19 = vector.load %arg7[%c0_15, %c0_16] : memref<1x128xf32, #tpu.memory_space<vmem>>, vector<1x128xf32>
    %20 = vector.broadcast %19 : vector<1x128xf32> to vector<128x128xf32>
    %21 = arith.addf %18, %20 : vector<128x128xf32>
    %cst_17 = arith.constant 0.00999999977 : f32
    %22 = vector.broadcast %cst_17 : f32 to vector<128x128xf32>
    %23 = arith.mulf %22, %21 : vector<128x128xf32>
    %24 = arith.maximumf %21, %23 : vector<128x128xf32>
    %cst_18 = arith.constant dense<0.000000e+00> : vector<128xf32>
    %25 = vector.multi_reduction <add>, %24, %cst_18 [1] : vector<128x128xf32> to vector<128xf32>
    %26 = vector.shape_cast %25 : vector<128xf32> to vector<128x1xf32>
    %cst_19 = arith.constant 0.0833333358 : f32
    %27 = vector.broadcast %cst_19 : f32 to vector<128x1xf32>
    %28 = arith.mulf %26, %27 : vector<128x1xf32>
    %cst_20 = arith.constant 0.000000e+00 : f32
    %29 = vector.broadcast %cst_20 : f32 to vector<128x1xf32>
    %30 = arith.subf %29, %28 : vector<128x1xf32>
    %31 = math.exp %30 : vector<128x1xf32>
    %cst_21 = arith.constant 1.000000e+00 : f32
    %32 = vector.broadcast %cst_21 : f32 to vector<128x1xf32>
    %33 = arith.addf %32, %31 : vector<128x1xf32>
    %34 = tpu.reciprocal %33 {approx = true} : vector<128x1xf32> -> vector<128x1xf32>
    %c0_22 = arith.constant 0 : index
    %c0_23 = arith.constant 0 : index
    %35 = vector.load %arg8[%c0_22, %c0_23] : memref<128x1xf32, #tpu.memory_space<vmem>>, vector<128x1xf32>
    tpu.vector_store %arg8[%c0_22, %c0_23], %34 {strides = array<i32>} : memref<128x1xf32, #tpu.memory_space<vmem>>, vector<128x1xf32>,
    return
  }
  func.func @transform_0(%arg0: i32) -> (i32, i32) {
    %c0_i32 = arith.constant 0 : i32
    %c0_i32_0 = arith.constant 0 : i32
    return %arg0, %c0_i32 : i32, i32
  }
  func.func @transform_1(%arg0: i32) -> (i32, i32) {
    %c0_i32 = arith.constant 0 : i32
    %c0_i32_0 = arith.constant 0 : i32
    %c0_i32_1 = arith.constant 0 : i32
    return %c0_i32, %c0_i32_0 : i32, i32
  }
  func.func @transform_2(%arg0: i32) -> (i32, i32) {
    %c0_i32 = arith.constant 0 : i32
    %c0_i32_0 = arith.constant 0 : i32
    %c0_i32_1 = arith.constant 0 : i32
    return %c0_i32, %c0_i32_0 : i32, i32
  }
  func.func @transform_3(%arg0: i32) -> (i32, i32) {
    %c0_i32 = arith.constant 0 : i32
    %c0_i32_0 = arith.constant 0 : i32
    %c0_i32_1 = arith.constant 0 : i32
    return %c0_i32, %c0_i32_0 : i32, i32
  }
  func.func @transform_4(%arg0: i32) -> (i32, i32) {
    %c0_i32 = arith.constant 0 : i32
    %c0_i32_0 = arith.constant 0 : i32
    %c0_i32_1 = arith.constant 0 : i32
    return %c0_i32, %c0_i32_0 : i32, i32
  }
  func.func @transform_5(%arg0: i32) -> (i32, i32) {
    %c0_i32 = arith.constant 0 : i32
    %c0_i32_0 = arith.constant 0 : i32
    %c0_i32_1 = arith.constant 0 : i32
    return %c0_i32, %c0_i32_0 : i32, i32
  }
  func.func @transform_6(%arg0: i32) -> (i32, i32) {
    %c0_i32 = arith.constant 0 : i32
    %c0_i32_0 = arith.constant 0 : i32
    %c0_i32_1 = arith.constant 0 : i32
    return %c0_i32, %c0_i32_0 : i32, i32
  }
  func.func @transform_7(%arg0: i32) -> (i32, i32) {
    %c0_i32 = arith.constant 0 : i32
    %c0_i32_0 = arith.constant 0 : i32
    return %arg0, %c0_i32 : i32, i32
  }
}

</mosaic_0001>

<llo_original>
// kernel: tpu_custom_call.1
$region0: #{tpu_custom_call.1}
  #allocation0 [shape = 'u32[]', space=smem, size = 0x4, offset = 0x4, fixed_abs, tag = 'smem constant byte address 0x4 - core index']
  #allocation1 [shape = 'u32[144,128]{1,0:T(1,128)}', space=vmem, size = 0x12000, scoped, tag = 'internal scratch']
  %s0 = inlined_call_operand.hbm [shape: f32[512,128], index: 0, kind: input, shape index: {}]
  %s1 = inlined_call_operand.hbm [shape: f32[128,384], index: 1, kind: input, shape index: {}]
  %s2 = inlined_call_operand.vmem [shape: f32[1,384], index: 2, kind: input, shape index: {}]
  %s3 = inlined_call_operand.hbm [shape: f32[384,256], index: 3, kind: input, shape index: {}]
  %s4 = inlined_call_operand.vmem [shape: f32[1,256], index: 4, kind: input, shape index: {}]
  %s5 = inlined_call_operand.hbm [shape: f32[256,128], index: 5, kind: input, shape index: {}]
  %s6 = inlined_call_operand.vmem [shape: f32[1,128], index: 6, kind: input, shape index: {}]
  %s7 = inlined_call_operand.vmem [shape: f32[512,1], index: 7, kind: output, shape index: {}]
  %s8 = sld [smem:[#allocation0]]
  $region77: #{tpu_custom_call.1} parent=0
    _
  %s10 = ssub.s32 1, %s8
  %s11 = scalar_select 0, %s10, %s8
  $region1: #{tpu_custom_call.1} parent=0
    #allocation2 [shape = 'u8[131072]{0}', space=vmem, size = 0x20000, scoped, tag = 'input window, operand 0']
    #allocation3 [shape = 's32[2]{0}', space=sflag, size = 0x8, scoped, tag = 'scoped memory for tpu_custom_call.1']
    #allocation4 [shape = 'u8[196608]{0}', space=vmem, size = 0x30000, scoped, tag = 'input window, operand 1, single buffered']
    #allocation5 [shape = 's32[1]{0}', space=sflag, size = 0x4, scoped, tag = 'scoped memory for tpu_custom_call.1']
    #allocation6 [shape = 'u8[393216]{0}', space=vmem, size = 0x60000, scoped, tag = 'input window, operand 3, single buffered']
    #allocation7 [shape = 'u8[131072]{0}', space=vmem, size = 0x20000, scoped, tag = 'input window, operand 5, single buffered']
    #allocation8 [shape = 's32[1]{0}', space=sflag, size = 0x4, scoped, tag = 'scoped memory for tpu_custom_call.1']
    %12 = vsyncpa [#allocation3], 0
    %s13 = scalar_lea.sflag [#allocation3], 1
    %14 = vsyncpa %s13, 0
    %15 = vsyncpa [#allocation5], 0
    %16 = vsyncpa [#allocation8], 0
    loop: start=0, step=1, limit=6
    $region2: #{tpu_custom_call.1} parent=1 // loop_pre_header
      _
    $region3: #{tpu_custom_call.1} parent=1 // loop_header
      %s18 = sphi 0, %s22
      %p19 = scmp.ge.s32.totalorder %s18, 6
      %s28 = sphi 0, %s30
      %s31 = sphi 0, %s28
      %s32 = sphi 0, %s31
      %s48 = sphi 0, %s32
      %s52 = sphi 0, %s52
      %s54 = sphi 0, %s52
      %s55 = sphi 0, %s54
      %s69 = sphi 0, %s55
      %s73 = sphi 0, %s73
      %s75 = sphi 0, %s73
      %s76 = sphi 0, %s75
      %s90 = sphi 0, %s76
      %s94 = sphi 0, %s94
      %s96 = sphi 0, %s94
      %s97 = sphi 0, %s96
      %s111 = sphi 0, %s97
      %s115 = sphi 0, %s115
      %s117 = sphi 0, %s115
      %s118 = sphi 0, %s117
      %s132 = sphi 0, %s118
      %s136 = sphi 0, %s136
      %s138 = sphi 0, %s136
      %s139 = sphi 0, %s138
      %s153 = sphi 0, %s139
      %s157 = sphi 0, %s157
      %s159 = sphi 0, %s157
      %s160 = sphi 0, %s159
      %s174 = sphi 0, %s160
      %s180 = sphi 0, %s182
      %s183 = sphi 0, %s180
      %s184 = sphi 0, %s183
      %s200 = sphi 0, %s184
    $region4: #{tpu_custom_call.1} parent=1 // loop_header_branch
      %21 = sbr.rel (%p19) target = $region8
    $region5: #{tpu_custom_call.1} parent=1 // loop_body
      %s23 = ssub.s32 %s18, 1
      %s24 = ssub.s32 %s18, 2
      %s25 = sadd.s32 %s18, 1
      %s26 = ssub.s32 %s18, %s25
      %p27 = scmp.eq.s32.totalorder %s26, 0
      %s29 = sadd.s32 %s28, 1
      %s30 = scalar_select %p27, %s28, %s29
      %p33 = pneg %p27
      %p34 = scmp.eq.s32.totalorder %s18, 3
      %p35 = por %p33, %p34
      %p36 = scmp.ne.s32.totalorder %s28, %s31
      %p37 = scmp.eq.s32.totalorder %s18, 0
      %p38 = por %p36, %p37
      %p39 = scmp.ne.s32.totalorder %s28, %s31
      %p40 = scmp.eq.s32.totalorder %s23, 3
      %p41 = por %p39, %p40
      %p42 = scmp.ne.s32.totalorder %s31, %s32
      %p43 = scmp.eq.s32.totalorder %s23, 0
      %p44 = por %p42, %p43
      %p45 = scmp.ne.s32.totalorder %s31, %s32
      %p46 = scmp.eq.s32.totalorder %s24, 3
      %p47 = por %p45, %p46
      %p49 = scmp.ne.s32.totalorder %s32, %s48
      %p50 = scmp.eq.s32.totalorder %s24, 0
      %p51 = por %p49, %p50
      %s53 = sadd.s32 %s52, 1
      %p56 = scmp.eq.s32.totalorder %s18, 3
      %p57 = scmp.ne.s32.totalorder %s52, %s54
      %p58 = scmp.eq.s32.totalorder %s18, 0
      %p59 = por %p57, %p58
      %p60 = scmp.ne.s32.totalorder %s52, %s54
      %p61 = scmp.eq.s32.totalorder %s23, 3
      %p62 = por %p60, %p61
      %p63 = scmp.ne.s32.totalorder %s54, %s55
      %p64 = scmp.eq.s32.totalorder %s23, 0
      %p65 = por %p63, %p64
      %p66 = scmp.ne.s32.totalorder %s54, %s55
      %p67 = scmp.eq.s32.totalorder %s24, 3
      %p68 = por %p66, %p67
      %p70 = scmp.ne.s32.totalorder %s55, %s69
      %p71 = scmp.eq.s32.totalorder %s24, 0
      %p72 = por %p70, %p71
      %s74 = sadd.s32 %s73, 1
      %p77 = scmp.eq.s32.totalorder %s18, 3
      %p78 = scmp.ne.s32.totalorder %s73, %s75
      %p79 = scmp.eq.s32.totalorder %s18, 0
      %p80 = por %p78, %p79
      %p81 = scmp.ne.s32.totalorder %s73, %s75
      %p82 = scmp.eq.s32.totalorder %s23, 3
      %p83 = por %p81, %p82
      %p84 = scmp.ne.s32.totalorder %s75, %s76
      %p85 = scmp.eq.s32.totalorder %s23, 0
      %p86 = por %p84, %p85
      %p87 = scmp.ne.s32.totalorder %s75, %s76
      %p88 = scmp.eq.s32.totalorder %s24, 3
      %p89 = por %p87, %p88
      %p91 = scmp.ne.s32.totalorder %s76, %s90
      %p92 = scmp.eq.s32.totalorder %s24, 0
      %p93 = por %p91, %p92
      %s95 = sadd.s32 %s94, 1
      %p98 = scmp.eq.s32.totalorder %s18, 3
      %p99 = scmp.ne.s32.totalorder %s94, %s96
      %p100 = scmp.eq.s32.totalorder %s18, 0
      %p101 = por %p99, %p100
      %p102 = scmp.ne.s32.totalorder %s94, %s96
      %p103 = scmp.eq.s32.totalorder %s23, 3
      %p104 = por %p102, %p103
      %p105 = scmp.ne.s32.totalorder %s96, %s97
      %p106 = scmp.eq.s32.totalorder %s23, 0
      %p107 = por %p105, %p106
      %p108 = scmp.ne.s32.totalorder %s96, %s97
      %p109 = scmp.eq.s32.totalorder %s24, 3
      %p110 = por %p108, %p109
      %p112 = scmp.ne.s32.totalorder %s97, %s111
      %p113 = scmp.eq.s32.totalorder %s24, 0
      %p114 = por %p112, %p113
      %s116 = sadd.s32 %s115, 1
      %p119 = scmp.eq.s32.totalorder %s18, 3
      %p120 = scmp.ne.s32.totalorder %s115, %s117
      %p121 = scmp.eq.s32.totalorder %s18, 0
      %p122 = por %p120, %p121
      %p123 = scmp.ne.s32.totalorder %s115, %s117
      %p124 = scmp.eq.s32.totalorder %s23, 3
      %p125 = por %p123, %p124
      %p126 = scmp.ne.s32.totalorder %s117, %s118
      %p127 = scmp.eq.s32.totalorder %s23, 0
      %p128 = por %p126, %p127
      %p129 = scmp.ne.s32.totalorder %s117, %s118
      %p130 = scmp.eq.s32.totalorder %s24, 3
      %p131 = por %p129, %p130
      %p133 = scmp.ne.s32.totalorder %s118, %s132
      %p134 = scmp.eq.s32.totalorder %s24, 0
      %p135 = por %p133, %p134
      %s137 = sadd.s32 %s136, 1
      %p140 = scmp.eq.s32.totalorder %s18, 3
      %p141 = scmp.ne.s32.totalorder %s136, %s138
      %p142 = scmp.eq.s32.totalorder %s18, 0
      %p143 = por %p141, %p142
      %p144 = scmp.ne.s32.totalorder %s136, %s138
      %p145 = scmp.eq.s32.totalorder %s23, 3
      %p146 = por %p144, %p145
      %p147 = scmp.ne.s32.totalorder %s138, %s139
      %p148 = scmp.eq.s32.totalorder %s23, 0
      %p149 = por %p147, %p148
      %p150 = scmp.ne.s32.totalorder %s138, %s139
      %p151 = scmp.eq.s32.totalorder %s24, 3
      %p152 = por %p150, %p151
      %p154 = scmp.ne.s32.totalorder %s139, %s153
      %p155 = scmp.eq.s32.totalorder %s24, 0
      %p156 = por %p154, %p155
      %s158 = sadd.s32 %s157, 1
      %p161 = scmp.eq.s32.totalorder %s18, 3
      %p162 = scmp.ne.s32.totalorder %s157, %s159
      %p163 = scmp.eq.s32.totalorder %s18, 0
      %p164 = por %p162, %p163
      %p165 = scmp.ne.s32.totalorder %s157, %s159
      %p166 = scmp.eq.s32.totalorder %s23, 3
      %p167 = por %p165, %p166
      %p168 = scmp.ne.s32.totalorder %s159, %s160
      %p169 = scmp.eq.s32.totalorder %s23, 0
      %p170 = por %p168, %p169
      %p171 = scmp.ne.s32.totalorder %s159, %s160
      %p172 = scmp.eq.s32.totalorder %s24, 3
      %p173 = por %p171, %p172
      %p175 = scmp.ne.s32.totalorder %s160, %s174
      %p176 = scmp.eq.s32.totalorder %s24, 0
      %p177 = por %p175, %p176
      %s178 = ssub.s32 %s18, %s25
      %p179 = scmp.eq.s32.totalorder %s178, 0
      %s181 = sadd.s32 %s180, 1
      %s182 = scalar_select %p179, %s180, %s181
      %p185 = pneg %p179
      %p186 = scmp.eq.s32.totalorder %s18, 3
      %p187 = por %p185, %p186
      %p188 = scmp.ne.s32.totalorder %s180, %s183
      %p189 = scmp.eq.s32.totalorder %s18, 0
      %p190 = por %p188, %p189
      %p191 = scmp.ne.s32.totalorder %s180, %s183
      %p192 = scmp.eq.s32.totalorder %s23, 3
      %p193 = por %p191, %p192
      %p194 = scmp.ne.s32.totalorder %s183, %s184
      %p195 = scmp.eq.s32.totalorder %s23, 0
      %p196 = por %p194, %p195
      %p197 = scmp.ne.s32.totalorder %s183, %s184
      %p198 = scmp.eq.s32.totalorder %s24, 3
      %p199 = por %p197, %p198
      %p201 = scmp.ne.s32.totalorder %s184, %s200
      %p202 = scmp.eq.s32.totalorder %s24, 0
      %p203 = por %p201, %p202
      %p204 = scmp.le.s32.totalorder 1, %s18
      %p205 = scmp.lt.s32.totalorder %s18, 5
      %p206 = pnand %p204, %p205
      %p207 = pneg %p206
      // Predicated region
      $region9: #{tpu_custom_call.1} parent=5 // pred_check
        _
      $region10: #{tpu_custom_call.1} parent=5 // pred_check_branch
        %209 = sbr.rel (%p206) target = $region12
      $region11: #{tpu_custom_call.1} parent=5 // pred_region
        %s210 = ssub.s32 %s18, 1
        // Predicated region
        $region13: #{tpu_custom_call.1} parent=11 // pred_check
          %p211 = pneg %p65
        $region14: #{tpu_custom_call.1} parent=11 // pred_check_branch
          %213 = sbr.rel (%p211) target = $region16
        $region15: #{tpu_custom_call.1} parent=11 // pred_region
          %s215 = ssub.s32 6144, 6144
          %216 = vsyncadd [#allocation5], %s215
          %s217 = sshll.u32 [#allocation4], 4
          %s218 = int_to_ptr.vmem [resolvable:$true] %s217
          %223 = dma.hbm_to_vmem [thread:$0]  %s1, 6144, %s218, [#allocation5], 384, 384, 24
        $region16: #{tpu_custom_call.1} parent=11 // pred_fallthru
          _
        // Predicated region
        $region17: #{tpu_custom_call.1} parent=11 // pred_check
          %p224 = pneg %p86
        $region18: #{tpu_custom_call.1} parent=11 // pred_check_branch
          %226 = sbr.rel (%p224) target = $region20
        $region19: #{tpu_custom_call.1} parent=11 // pred_region
          _
        $region20: #{tpu_custom_call.1} parent=11 // pred_fallthru
          _
        // Predicated region
        $region21: #{tpu_custom_call.1} parent=11 // pred_check
          %p227 = pneg %p107
        $region22: #{tpu_custom_call.1} parent=11 // pred_check_branch
          %229 = sbr.rel (%p227) target = $region24
        $region23: #{tpu_custom_call.1} parent=11 // pred_region
          %s231 = ssub.s32 12288, 12288
          %232 = vsyncadd [#allocation5], %s231
          %s233 = sshll.u32 [#allocation6], 4
          %s234 = int_to_ptr.vmem [resolvable:$true] %s233
          %239 = dma.hbm_to_vmem [thread:$0]  %s3, 12288, %s234, [#allocation5], 256, 256, 16
        $region24: #{tpu_custom_call.1} parent=11 // pred_fallthru
          _
        // Predicated region
        $region25: #{tpu_custom_call.1} parent=11 // pred_check
          %p240 = pneg %p128
        $region26: #{tpu_custom_call.1} parent=11 // pred_check_branch
          %242 = sbr.rel (%p240) target = $region28
        $region27: #{tpu_custom_call.1} parent=11 // pred_region
          _
        $region28: #{tpu_custom_call.1} parent=11 // pred_fallthru
          _
        // Predicated region
        $region29: #{tpu_custom_call.1} parent=11 // pred_check
          %p243 = pneg %p149
        $region30: #{tpu_custom_call.1} parent=11 // pred_check_branch
          %245 = sbr.rel (%p243) target = $region32
        $region31: #{tpu_custom_call.1} parent=11 // pred_region
          %s247 = ssub.s32 4096, 4096
          %248 = vsyncadd [#allocation8], %s247
          %s249 = sshll.u32 [#allocation7], 4
          %s250 = int_to_ptr.vmem [resolvable:$true] %s249
          %255 = dma.hbm_to_vmem [thread:$0]  %s5, 4096, %s250, [#allocation8], 128, 128, 8
        $region32: #{tpu_custom_call.1} parent=11 // pred_fallthru
          _
        // Predicated region
        $region33: #{tpu_custom_call.1} parent=11 // pred_check
          %p256 = pneg %p170
        $region34: #{tpu_custom_call.1} parent=11 // pred_check_branch
          %258 = sbr.rel (%p256) target = $region36
        $region35: #{tpu_custom_call.1} parent=11 // pred_region
          _
        $region36: #{tpu_custom_call.1} parent=11 // pred_fallthru
          _
      $region12: #{tpu_custom_call.1} parent=5 // pred_fallthru
        _
      %p259 = scmp.lt.s32.totalorder %s18, 4
      // Predicated region
      $region37: #{tpu_custom_call.1} parent=5 // pred_check
        %p260 = pneg %p259
      $region38: #{tpu_custom_call.1} parent=5 // pred_check_branch
        %262 = sbr.rel (%p260) target = $region40
      $region39: #{tpu_custom_call.1} parent=5 // pred_region
        // Predicated region
        $region41: #{tpu_custom_call.1} parent=39 // pred_check
          %p263 = pneg %p38
        $region42: #{tpu_custom_call.1} parent=39 // pred_check_branch
          %265 = sbr.rel (%p263) target = $region44
        $region43: #{tpu_custom_call.1} parent=39 // pred_region
          %s266 = sand.u32 %s28, 1
          %s267 = scalar_lea.sflag [#allocation3], %s266
          %s268 = sand.u32 %s28, 1
          %s269 = smul.addr %s268, 128
          %s270 = scalar_lea.vmem [#allocation2], %s269
          %s271 = smul.u32 16, %s18
          %s273 = ssub.s32 2048, 2048
          %274 = vsyncadd %s267, %s273
          %s275 = smul.addr %s271, 128
          %s276 = scalar_lea.hbm %s0, %s275
          %s277 = sshll.u32 %s270, 4
          %s278 = int_to_ptr.vmem [resolvable:$true] %s277
          %283 = dma.hbm_to_vmem [thread:$0]  %s276, 2048, %s278, %s267, 128, 128, 8
        $region44: #{tpu_custom_call.1} parent=39 // pred_fallthru
          _
      $region40: #{tpu_custom_call.1} parent=5 // pred_fallthru
        _
      %p284 = scmp.le.s32.totalorder 1, %s18
      %p285 = scmp.lt.s32.totalorder %s18, 5
      %p286 = pnand %p284, %p285
      %p287 = pneg %p286
      // Predicated region
      $region45: #{tpu_custom_call.1} parent=5 // pred_check
        _
      $region46: #{tpu_custom_call.1} parent=5 // pred_check_branch
        %289 = sbr.rel (%p286) target = $region48
      $region47: #{tpu_custom_call.1} parent=5 // pred_region
        %s290 = ssub.s32 %s18, 1
        %s291 = sand.u32 %s31, 1
        %s292 = scalar_lea.sflag [#allocation3], %s291
        %s293 = sand.u32 %s31, 1
        %s294 = smul.addr %s293, 128
        %s295 = scalar_lea.vmem [#allocation2], %s294
        // Predicated region
        $region49: #{tpu_custom_call.1} parent=47 // pred_check
          %p296 = pneg %p44
        $region50: #{tpu_custom_call.1} parent=47 // pred_check_branch
          %298 = sbr.rel (%p296) target = $region52
        $region51: #{tpu_custom_call.1} parent=47 // pred_region
          %299 = dma.done %s292, 2048
        $region52: #{tpu_custom_call.1} parent=47 // pred_fallthru
          _
        // Predicated region
        $region53: #{tpu_custom_call.1} parent=47 // pred_check
          %p300 = pneg %p65
        $region54: #{tpu_custom_call.1} parent=47 // pred_check_branch
          %302 = sbr.rel (%p300) target = $region56
        $region55: #{tpu_custom_call.1} parent=47 // pred_region
          %303 = dma.done [#allocation5], 6144
        $region56: #{tpu_custom_call.1} parent=47 // pred_fallthru
          _
        // Predicated region
        $region57: #{tpu_custom_call.1} parent=47 // pred_check
          %p304 = pneg %p107
        $region58: #{tpu_custom_call.1} parent=47 // pred_check_branch
          %306 = sbr.rel (%p304) target = $region60
        $region59: #{tpu_custom_call.1} parent=47 // pred_region
          %307 = dma.done [#allocation5], 12288
        $region60: #{tpu_custom_call.1} parent=47 // pred_fallthru
          _
        // Predicated region
        $region61: #{tpu_custom_call.1} parent=47 // pred_check
          %p308 = pneg %p149
        $region62: #{tpu_custom_call.1} parent=47 // pred_check_branch
          %310 = sbr.rel (%p308) target = $region64
        $region63: #{tpu_custom_call.1} parent=47 // pred_region
          %311 = dma.done [#allocation8], 4096
        $region64: #{tpu_custom_call.1} parent=47 // pred_fallthru
          _
        %s312 = sand.u32 %s31, 1
        %s313 = scalar_lea.sflag [#allocation3], %s312
        %s314 = sand.u32 %s31, 1
        %s315 = smul.addr %s314, 128
        %s316 = scalar_lea.vmem [#allocation2], %s315
        %p317 = pneg %p44
        %p318 = pneg %p41
        %p319 = pneg %p65
        %p320 = pneg %p62
        %p321 = pneg %p86
        %p322 = pneg %p83
        %p323 = pneg %p107
        %p324 = pneg %p104
        %p325 = pneg %p128
        %p326 = pneg %p125
        %p327 = pneg %p149
        %p328 = pneg %p146
        %p329 = pneg %p170
        %p330 = pneg %p167
        %p331 = pneg %p196
        %p332 = pneg %p193
        %s333 = smul.u32 16, %s23
        %p334 = scmp.lt.s32.totalorder %s333, 63
        %s335 = scalar_select %p334, %s333, 63
        %s336 = smul.addr %s335, 8
        %s337 = scalar_lea.vmem %s7, %s336
        %s338 = smul.u32 16, %s23
        %s339 = smul.u32 16, %s23
        %p340 = scmp.lt.s32.totalorder %s339, 63
        %s341 = scalar_select %p340, %s339, 63
        %s342 = smul.addr %s341, 8
        %s343 = scalar_lea.vmem %s7, %s342
        %s344 = smul.u32 16, %s23
        %v345 = vld [vmem:[%s295] sm:$0xff]
        %v346 = vld [vmem:[%s295 + $0x8] sm:$0xff]
        %v347 = vld [vmem:[%s295 + $0x10] sm:$0xff]
        %v348 = vld [vmem:[%s295 + $0x18] sm:$0xff]
        %v349 = vld [vmem:[%s295 + $0x20] sm:$0xff]
        %v350 = vld [vmem:[%s295 + $0x28] sm:$0xff]
        %v351 = vld [vmem:[%s295 + $0x30] sm:$0xff]
        %v352 = vld [vmem:[%s295 + $0x38] sm:$0xff]
        %v353 = vld [vmem:[%s295 + $0x40] sm:$0xff]
        %v354 = vld [vmem:[%s295 + $0x48] sm:$0xff]
        %v355 = vld [vmem:[%s295 + $0x50] sm:$0xff]
        %v356 = vld [vmem:[%s295 + $0x58] sm:$0xff]
        %v357 = vld [vmem:[%s295 + $0x60] sm:$0xff]
        %v358 = vld [vmem:[%s295 + $0x68] sm:$0xff]
        %v359 = vld [vmem:[%s295 + $0x70] sm:$0xff]
        %v360 = vld [vmem:[%s295 + $0x78] sm:$0xff]
        %v361 = vld [vmem:[#allocation4] sm:$0xff]
        %v362 = vld [vmem:[#allocation4 + $0x8] sm:$0xff]
        %v363 = vld [vmem:[#allocation4 + $0x10] sm:$0xff]
        %v364 = vld [vmem:[#allocation4 + $0x18] sm:$0xff]
        %v365 = vld [vmem:[#allocation4 + $0x20] sm:$0xff]
        %v366 = vld [vmem:[#allocation4 + $0x28] sm:$0xff]
        %v367 = vld [vmem:[#allocation4 + $0x30] sm:$0xff]
        %v368 = vld [vmem:[#allocation4 + $0x38] sm:$0xff]
        %v369 = vld [vmem:[#allocation4 + $0x40] sm:$0xff]
        %v370 = vld [vmem:[#allocation4 + $0x48] sm:$0xff]
        %v371 = vld [vmem:[#allocation4 + $0x50] sm:$0xff]
        %v372 = vld [vmem:[#allocation4 + $0x58] sm:$0xff]
        %v373 = vld [vmem:[#allocation4 + $0x60] sm:$0xff]
        %v374 = vld [vmem:[#allocation4 + $0x68] sm:$0xff]
        %v375 = vld [vmem:[#allocation4 + $0x70] sm:$0xff]
        %v376 = vld [vmem:[#allocation4 + $0x78] sm:$0xff]
        %v377 = vld [vmem:[#allocation4 + $0x80] sm:$0xff]
        %v378 = vld [vmem:[#allocation4 + $0x88] sm:$0xff]
        %v379 = vld [vmem:[#allocation4 + $0x90] sm:$0xff]
        %v380 = vld [vmem:[#allocation4 + $0x98] sm:$0xff]
        %v381 = vld [vmem:[#allocation4 + $0xa0] sm:$0xff]
        %v382 = vld [vmem:[#allocation4 + $0xa8] sm:$0xff]
        %v383 = vld [vmem:[#allocation4 + $0xb0] sm:$0xff]
        %v384 = vld [vmem:[#allocation4 + $0xb8] sm:$0xff]
        %v385 = vld [vmem:[#allocation4 + $0xc0] sm:$0xff]
        %v386 = vld [vmem:[#allocation4 + $0xc8] sm:$0xff]
        %v387 = vld [vmem:[#allocation4 + $0xd0] sm:$0xff]
        %v388 = vld [vmem:[#allocation4 + $0xd8] sm:$0xff]
        %v389 = vld [vmem:[#allocation4 + $0xe0] sm:$0xff]
        %v390 = vld [vmem:[#allocation4 + $0xe8] sm:$0xff]
        %v391 = vld [vmem:[#allocation4 + $0xf0] sm:$0xff]
        %v392 = vld [vmem:[#allocation4 + $0xf8] sm:$0xff]
        %v393 = vld [vmem:[#allocation4 + $0x100] sm:$0xff]
        %v394 = vld [vmem:[#allocation4 + $0x108] sm:$0xff]
        %v395 = vld [vmem:[#allocation4 + $0x110] sm:$0xff]
        %v396 = vld [vmem:[#allocation4 + $0x118] sm:$0xff]
        %v397 = vld [vmem:[#allocation4 + $0x120] sm:$0xff]
        %v398 = vld [vmem:[#allocation4 + $0x128] sm:$0xff]
        %v399 = vld [vmem:[#allocation4 + $0x130] sm:$0xff]
        %v400 = vld [vmem:[#allocation4 + $0x138] sm:$0xff]
        %v401 = vld [vmem:[#allocation4 + $0x140] sm:$0xff]
        %v402 = vld [vmem:[#allocation4 + $0x148] sm:$0xff]
        %v403 = vld [vmem:[#allocation4 + $0x150] sm:$0xff]
        %v404 = vld [vmem:[#allocation4 + $0x158] sm:$0xff]
        %v405 = vld [vmem:[#allocation4 + $0x160] sm:$0xff]
        %v406 = vld [vmem:[#allocation4 + $0x168] sm:$0xff]
        %v407 = vld [vmem:[#allocation4 + $0x170] sm:$0xff]
        %v408 = vld [vmem:[#allocation4 + $0x178] sm:$0xff]
        %v409 = vld [vmem:[%s2] sm:$0x7]
        %v411 = vlaneseq
        %v412 = vshrl.u32 %v411, 7
        %v413 = vsub.s32 0, %v412
        %v414 = vrot.slane %v409, %v413
        %v415 = vlaneseq
        %v416 = vshrl.u32 %v415, 7
        %v417 = vsub.s32 1, %v416
        %v418 = vrot.slane %v409, %v417
        %v419 = vlaneseq
        %v420 = vshrl.u32 %v419, 7
        %v421 = vsub.s32 2, %v420
        %v422 = vrot.slane %v409, %v421
        %426 = vmatprep.subr.mxu0 %v362
        %427 = vmatpush1.msra.mxu0 %v361
        %428 = vmatprep.subr.mxu0 %v365
        %429 = vmatpush1.msra.mxu0 %v364
        %430 = vmatprep.subr.mxu0 %v368
        %431 = vmatpush1.msra.mxu0 %v367
        %432 = vmatprep.subr.mxu0 %v371
        %433 = vmatpush1.msra.mxu0 %v370
        %434 = vmatprep.subr.mxu0 %v374
        %435 = vmatpush1.msra.mxu0 %v373
        %436 = vmatprep.subr.mxu0 %v377
        %437 = vmatpush1.msra.mxu0 %v376
        %438 = vmatprep.subr.mxu0 %v380
        %439 = vmatpush1.msra.mxu0 %v379
        %440 = vmatprep.subr.mxu0 %v383
        %441 = vmatpush1.msra.mxu0 %v382
        %442 = vmatprep.subr.mxu0 %v386
        %443 = vmatpush1.msra.mxu0 %v385
        %444 = vmatprep.subr.mxu0 %v389
        %445 = vmatpush1.msra.mxu0 %v388
        %446 = vmatprep.subr.mxu0 %v392
        %447 = vmatpush1.msra.mxu0 %v391
        %448 = vmatprep.subr.mxu0 %v395
        %449 = vmatpush1.msra.mxu0 %v394
        %450 = vmatprep.subr.mxu0 %v398
        %451 = vmatpush1.msra.mxu0 %v397
        %452 = vmatprep.subr.mxu0 %v401
        %453 = vmatpush1.msra.mxu0 %v400
        %454 = vmatprep.subr.mxu0 %v404
        %455 = vmatpush1.msra.mxu0 %v403
        %456 = vmatprep.subr.mxu0 %v407
        %457 = vmatpush1.msra.mxu0 %v406
        %458 = vmatprep.subr.mxu0 0.0
        %459 = vmatpush1.msra.mxu0 0.0
        %460 = vmatprep.subr.mxu0 0.0
        %461 = vmatpush1.msra.mxu0 0.0
        %462 = vmatprep.subr.mxu0 0.0
        %463 = vmatpush1.msra.mxu0 0.0
        %464 = vmatprep.subr.mxu0 0.0
        %465 = vmatpush1.msra.mxu0 0.0
        %466 = vmatprep.subr.mxu0 0.0
        %467 = vmatpush1.msra.mxu0 0.0
        %468 = vmatprep.subr.mxu0 0.0
        %469 = vmatpush1.msra.mxu0 0.0
        %470 = vmatprep.subr.mxu0 0.0
        %471 = vmatpush1.msra.mxu0 0.0
        %472 = vmatprep.subr.mxu0 0.0
        %473 = vmatpush1.msra.mxu0 0.0
        %474 = vmatprep.subr.mxu0 0.0
        %475 = vmatpush1.msra.mxu0 0.0
        %476 = vmatprep.subr.mxu0 0.0
        %477 = vmatpush1.msra.mxu0 0.0
        %478 = vmatprep.subr.mxu0 0.0
        %479 = vmatpush1.msra.mxu0 0.0
        %480 = vmatprep.subr.mxu0 0.0
        %481 = vmatpush1.msra.mxu0 0.0
        %482 = vmatprep.subr.mxu0 0.0
        %483 = vmatpush1.msra.mxu0 0.0
        %484 = vmatprep.subr.mxu0 0.0
        %485 = vmatpush1.msra.mxu0 0.0
        %486 = vmatprep.subr.mxu0 0.0
        %487 = vmatpush1.msra.mxu0 0.0
        %488 = vmatprep.subr.mxu0 0.0
        %489 = vmatpush1.msra.mxu0 0.0
        %490 = vmatprep.mubr.f32.mxu0 0.0
        %491 = vmatmul.mubr.f32.gmra.mrb[0].mxu0 %v345
        %v492 = vpop.f32.mrb[0].mxu0
        %v493 = vadd.f32 %v414, %v492
        %v494 = vpop.f32.mrb[0].mxu0
        %v495 = vadd.f32 %v418, %v494
        %496 = vmatprep.mubr.f32.mxu0 0.0
        %497 = vmatmul.mubr.f32.gmra.mrb[0].mxu0 %v346
        %v498 = vpop.f32.mrb[0].mxu0
        %v499 = vadd.f32 %v414, %v498
        %v500 = vpop.f32.mrb[0].mxu0
        %v501 = vadd.f32 %v418, %v500
        %502 = vmatprep.mubr.f32.mxu0 0.0
        %503 = vmatmul.mubr.f32.gmra.mrb[0].mxu0 %v347
        %v504 = vpop.f32.mrb[0].mxu0
        %v505 = vadd.f32 %v414, %v504
        %v506 = vpop.f32.mrb[0].mxu0
        %v507 = vadd.f32 %v418, %v506
        %508 = vmatprep.mubr.f32.mxu0 0.0
        %509 = vmatmul.mubr.f32.gmra.mrb[0].mxu0 %v348
        %v510 = vpop.f32.mrb[0].mxu0
        %v511 = vadd.f32 %v414, %v510
        %v512 = vpop.f32.mrb[0].mxu0
        %v513 = vadd.f32 %v418, %v512
        %514 = vmatprep.mubr.f32.mxu0 0.0
        %515 = vmatmul.mubr.f32.gmra.mrb[0].mxu0 %v349
        %v516 = vpop.f32.mrb[0].mxu0
        %v517 = vadd.f32 %v414, %v516
        %v518 = vpop.f32.mrb[0].mxu0
        %v519 = vadd.f32 %v418, %v518
        %520 = vmatprep.mubr.f32.mxu0 0.0
        %521 = vmatmul.mubr.f32.gmra.mrb[0].mxu0 %v350
        %v522 = vpop.f32.mrb[0].mxu0
        %v523 = vadd.f32 %v414, %v522
        %v524 = vpop.f32.mrb[0].mxu0
        %v525 = vadd.f32 %v418, %v524
        %526 = vmatprep.mubr.f32.mxu0 0.0
        %527 = vmatmul.mubr.f32.gmra.mrb[0].mxu0 %v351
        %v528 = vpop.f32.mrb[0].mxu0
        %v529 = vadd.f32 %v414, %v528
        %v530 = vpop.f32.mrb[0].mxu0
        %v531 = vadd.f32 %v418, %v530
        %532 = vmatprep.mubr.f32.mxu0 0.0
        %533 = vmatmul.mubr.f32.gmra.mrb[0].mxu0 %v352
        %v534 = vpop.f32.mrb[0].mxu0
        %v535 = vadd.f32 %v414, %v534
        %v536 = vpop.f32.mrb[0].mxu0
        %v537 = vadd.f32 %v418, %v536
        %538 = vmatprep.mubr.f32.mxu0 0.0
        %539 = vmatmul.mubr.f32.gmra.mrb[0].mxu0 %v353
        %v540 = vpop.f32.mrb[0].mxu0
        %v541 = vadd.f32 %v414, %v540
        %v542 = vpop.f32.mrb[0].mxu0
        %v543 = vadd.f32 %v418, %v542
        %544 = vmatprep.mubr.f32.mxu0 0.0
        %545 = vmatmul.mubr.f32.gmra.mrb[0].mxu0 %v354
        %v546 = vpop.f32.mrb[0].mxu0
        %v547 = vadd.f32 %v414, %v546
        %v548 = vpop.f32.mrb[0].mxu0
        %v549 = vadd.f32 %v418, %v548
        %550 = vmatprep.mubr.f32.mxu0 0.0
        %551 = vmatmul.mubr.f32.gmra.mrb[0].mxu0 %v355
        %v552 = vpop.f32.mrb[0].mxu0
        %v553 = vadd.f32 %v414, %v552
        %v554 = vpop.f32.mrb[0].mxu0
        %v555 = vadd.f32 %v418, %v554
        %556 = vmatprep.mubr.f32.mxu0 0.0
        %557 = vmatmul.mubr.f32.gmra.mrb[0].mxu0 %v356
        %v558 = vpop.f32.mrb[0].mxu0
        %v559 = vadd.f32 %v414, %v558
        %v560 = vpop.f32.mrb[0].mxu0
        %v561 = vadd.f32 %v418, %v560
        %562 = vmatprep.mubr.f32.mxu0 0.0
        %563 = vmatmul.mubr.f32.gmra.mrb[0].mxu0 %v357
        %v564 = vpop.f32.mrb[0].mxu0
        %v565 = vadd.f32 %v414, %v564
        %v566 = vpop.f32.mrb[0].mxu0
        %v567 = vadd.f32 %v418, %v566
        %568 = vmatprep.mubr.f32.mxu0 0.0
        %569 = vmatmul.mubr.f32.gmra.mrb[0].mxu0 %v358
        %v570 = vpop.f32.mrb[0].mxu0
        %v571 = vadd.f32 %v414, %v570
        %v572 = vpop.f32.mrb[0].mxu0
        %v573 = vadd.f32 %v418, %v572
        %574 = vmatprep.mubr.f32.mxu0 0.0
        %575 = vmatmul.mubr.f32.gmra.mrb[0].mxu0 %v359
        %v576 = vpop.f32.mrb[0].mxu0
        %v577 = vadd.f32 %v414, %v576
        %v578 = vpop.f32.mrb[0].mxu0
        %v579 = vadd.f32 %v418, %v578
        %580 = vmatprep.mubr.f32.mxu0 0.0
        %581 = vmatmul.mubr.f32.gmra.mrb[0].mxu0 %v360
        %v582 = vpop.f32.mrb[0].mxu0
        %v583 = vadd.f32 %v414, %v582
        %v584 = vpop.f32.mrb[0].mxu0
        %v585 = vadd.f32 %v418, %v584
        %586 = vdwg.mxu0
        %587 = vmatprep.subr.mxu0 0.0
        %588 = vmatpush1.msra.mxu0 %v363
        %589 = vmatprep.subr.mxu0 0.0
        %590 = vmatpush1.msra.mxu0 %v366
        %591 = vmatprep.subr.mxu0 0.0
        %592 = vmatpush1.msra.mxu0 %v369
        %593 = vmatprep.subr.mxu0 0.0
        %594 = vmatpush1.msra.mxu0 %v372
        %595 = vmatprep.subr.mxu0 0.0
        %596 = vmatpush1.msra.mxu0 %v375
        %597 = vmatprep.subr.mxu0 0.0
        %598 = vmatpush1.msra.mxu0 %v378
        %599 = vmatprep.subr.mxu0 0.0
        %600 = vmatpush1.msra.mxu0 %v381
        %601 = vmatprep.subr.mxu0 0.0
        %602 = vmatpush1.msra.mxu0 %v384
        %603 = vmatprep.subr.mxu0 0.0
        %604 = vmatpush1.msra.mxu0 %v387
        %605 = vmatprep.subr.mxu0 0.0
        %606 = vmatpush1.msra.mxu0 %v390
        %607 = vmatprep.subr.mxu0 0.0
        %608 = vmatpush1.msra.mxu0 %v393
        %609 = vmatprep.subr.mxu0 0.0
        %610 = vmatpush1.msra.mxu0 %v396
        %611 = vmatprep.subr.mxu0 0.0
        %612 = vmatpush1.msra.mxu0 %v399
        %613 = vmatprep.subr.mxu0 0.0
        %614 = vmatpush1.msra.mxu0 %v402
        %615 = vmatprep.subr.mxu0 0.0
        %616 = vmatpush1.msra.mxu0 %v405
        %617 = vmatprep.subr.mxu0 0.0
        %618 = vmatpush1.msra.mxu0 %v408
        %619 = vmatprep.subr.mxu0 0.0
        %620 = vmatpush1.msra.mxu0 0.0
        %621 = vmatprep.subr.mxu0 0.0
        %622 = vmatpush1.msra.mxu0 0.0
        %623 = vmatprep.subr.mxu0 0.0
        %624 = vmatpush1.msra.mxu0 0.0
        %625 = vmatprep.subr.mxu0 0.0
        %626 = vmatpush1.msra.mxu0 0.0
        %627 = vmatprep.subr.mxu0 0.0
        %628 = vmatpush1.msra.mxu0 0.0
        %629 = vmatprep.subr.mxu0 0.0
        %630 = vmatpush1.msra.mxu0 0.0
        %631 = vmatprep.subr.mxu0 0.0
        %632 = vmatpush1.msra.mxu0 0.0
        %633 = vmatprep.subr.mxu0 0.0
        %634 = vmatpush1.msra.mxu0 0.0
        %635 = vmatprep.subr.mxu0 0.0
        %636 = vmatpush1.msra.mxu0 0.0
        %637 = vmatprep.subr.mxu0 0.0
        %638 = vmatpush1.msra.mxu0 0.0
        %639 = vmatprep.subr.mxu0 0.0
        %640 = vmatpush1.msra.mxu0 0.0
        %641 = vmatprep.subr.mxu0 0.0
        %642 = vmatpush1.msra.mxu0 0.0
        %643 = vmatprep.subr.mxu0 0.0
        %644 = vmatpush1.msra.mxu0 0.0
        %645 = vmatprep.subr.mxu0 0.0
        %646 = vmatpush1.msra.mxu0 0.0
        %647 = vmatprep.subr.mxu0 0.0
        %648 = vmatpush1.msra.mxu0 0.0
        %649 = vmatprep.subr.mxu0 0.0
        %650 = vmatpush1.msra.mxu0 0.0
        %651 = vmatprep.mubr.f32.mxu0 0.0
        %652 = vmatmul.mubr.f32.gmra.mrb[0].mxu0 %v345
        %v653 = vpop.f32.mrb[0].mxu0
        %v654 = vadd.f32 %v422, %v653
        %v655 = vpop.f32.mrb[0].mxu0
        %656 = vmatprep.mubr.f32.mxu0 0.0
        %657 = vmatmul.mubr.f32.gmra.mrb[0].mxu0 %v346
        %v658 = vpop.f32.mrb[0].mxu0
        %v659 = vadd.f32 %v422, %v658
        %v660 = vpop.f32.mrb[0].mxu0
        %661 = vmatprep.mubr.f32.mxu0 0.0
        %662 = vmatmul.mubr.f32.gmra.mrb[0].mxu0 %v347
        %v663 = vpop.f32.mrb[0].mxu0
        %v664 = vadd.f32 %v422, %v663
        %v665 = vpop.f32.mrb[0].mxu0
        %666 = vmatprep.mubr.f32.mxu0 0.0
        %667 = vmatmul.mubr.f32.gmra.mrb[0].mxu0 %v348
        %v668 = vpop.f32.mrb[0].mxu0
        %v669 = vadd.f32 %v422, %v668
        %v670 = vpop.f32.mrb[0].mxu0
        %671 = vmatprep.mubr.f32.mxu0 0.0
        %672 = vmatmul.mubr.f32.gmra.mrb[0].mxu0 %v349
        %v673 = vpop.f32.mrb[0].mxu0
        %v674 = vadd.f32 %v422, %v673
        %v675 = vpop.f32.mrb[0].mxu0
        %676 = vmatprep.mubr.f32.mxu0 0.0
        %677 = vmatmul.mubr.f32.gmra.mrb[0].mxu0 %v350
        %v678 = vpop.f32.mrb[0].mxu0
        %v679 = vadd.f32 %v422, %v678
        %v680 = vpop.f32.mrb[0].mxu0
        %681 = vmatprep.mubr.f32.mxu0 0.0
        %682 = vmatmul.mubr.f32.gmra.mrb[0].mxu0 %v351
        %v683 = vpop.f32.mrb[0].mxu0
        %v684 = vadd.f32 %v422, %v683
        %v685 = vpop.f32.mrb[0].mxu0
        %686 = vmatprep.mubr.f32.mxu0 0.0
        %687 = vmatmul.mubr.f32.gmra.mrb[0].mxu0 %v352
        %v688 = vpop.f32.mrb[0].mxu0
        %v689 = vadd.f32 %v422, %v688
        %v690 = vpop.f32.mrb[0].mxu0
        %691 = vmatprep.mubr.f32.mxu0 0.0
        %692 = vmatmul.mubr.f32.gmra.mrb[0].mxu0 %v353
        %v693 = vpop.f32.mrb[0].mxu0
        %v694 = vadd.f32 %v422, %v693
        %v695 = vpop.f32.mrb[0].mxu0
        %696 = vmatprep.mubr.f32.mxu0 0.0
        %697 = vmatmul.mubr.f32.gmra.mrb[0].mxu0 %v354
        %v698 = vpop.f32.mrb[0].mxu0
        %v699 = vadd.f32 %v422, %v698
        %v700 = vpop.f32.mrb[0].mxu0
        %701 = vmatprep.mubr.f32.mxu0 0.0
        %702 = vmatmul.mubr.f32.gmra.mrb[0].mxu0 %v355
        %v703 = vpop.f32.mrb[0].mxu0
        %v704 = vadd.f32 %v422, %v703
        %v705 = vpop.f32.mrb[0].mxu0
        %706 = vmatprep.mubr.f32.mxu0 0.0
        %707 = vmatmul.mubr.f32.gmra.mrb[0].mxu0 %v356
        %v708 = vpop.f32.mrb[0].mxu0
        %v709 = vadd.f32 %v422, %v708
        %v710 = vpop.f32.mrb[0].mxu0
        %711 = vmatprep.mubr.f32.mxu0 0.0
        %712 = vmatmul.mubr.f32.gmra.mrb[0].mxu0 %v357
        %v713 = vpop.f32.mrb[0].mxu0
        %v714 = vadd.f32 %v422, %v713
        %v715 = vpop.f32.mrb[0].mxu0
        %716 = vmatprep.mubr.f32.mxu0 0.0
        %717 = vmatmul.mubr.f32.gmra.mrb[0].mxu0 %v358
        %v718 = vpop.f32.mrb[0].mxu0
        %v719 = vadd.f32 %v422, %v718
        %v720 = vpop.f32.mrb[0].mxu0
        %721 = vmatprep.mubr.f32.mxu0 0.0
        %722 = vmatmul.mubr.f32.gmra.mrb[0].mxu0 %v359
        %v723 = vpop.f32.mrb[0].mxu0
        %v724 = vadd.f32 %v422, %v723
        %v725 = vpop.f32.mrb[0].mxu0
        %726 = vmatprep.mubr.f32.mxu0 0.0
        %727 = vmatmul.mubr.f32.gmra.mrb[0].mxu0 %v360
        %v728 = vpop.f32.mrb[0].mxu0
        %v729 = vadd.f32 %v422, %v728
        %v730 = vpop.f32.mrb[0].mxu0
        %731 = vdwg.mxu0
        %v732 = vmul.f32 %v493, 0.01
        %v733 = vmul.f32 %v495, 0.01
        %v734 = vmul.f32 %v654, 0.01
        %v735 = vmul.f32 %v499, 0.01
        %v736 = vmul.f32 %v501, 0.01
        %v737 = vmul.f32 %v659, 0.01
        %v738 = vmul.f32 %v505, 0.01
        %v739 = vmul.f32 %v507, 0.01
        %v740 = vmul.f32 %v664, 0.01
        %v741 = vmul.f32 %v511, 0.01
        %v742 = vmul.f32 %v513, 0.01
        %v743 = vmul.f32 %v669, 0.01
        %v744 = vmul.f32 %v517, 0.01
        %v745 = vmul.f32 %v519, 0.01
        %v746 = vmul.f32 %v674, 0.01
        %v747 = vmul.f32 %v523, 0.01
        %v748 = vmul.f32 %v525, 0.01
        %v749 = vmul.f32 %v679, 0.01
        %v750 = vmul.f32 %v529, 0.01
        %v751 = vmul.f32 %v531, 0.01
        %v752 = vmul.f32 %v684, 0.01
        %v753 = vmul.f32 %v535, 0.01
        %v754 = vmul.f32 %v537, 0.01
        %v755 = vmul.f32 %v689, 0.01
        %v756 = vmul.f32 %v541, 0.01
        %v757 = vmul.f32 %v543, 0.01
        %v758 = vmul.f32 %v694, 0.01
        %v759 = vmul.f32 %v547, 0.01
        %v760 = vmul.f32 %v549, 0.01
        %v761 = vmul.f32 %v699, 0.01
        %v762 = vmul.f32 %v553, 0.01
        %v763 = vmul.f32 %v555, 0.01
        %v764 = vmul.f32 %v704, 0.01
        %v765 = vmul.f32 %v559, 0.01
        %v766 = vmul.f32 %v561, 0.01
        %v767 = vmul.f32 %v709, 0.01
        %v768 = vmul.f32 %v565, 0.01
        %v769 = vmul.f32 %v567, 0.01
        %v770 = vmul.f32 %v714, 0.01
        %v771 = vmul.f32 %v571, 0.01
        %v772 = vmul.f32 %v573, 0.01
        %v773 = vmul.f32 %v719, 0.01
        %v774 = vmul.f32 %v577, 0.01
        %v775 = vmul.f32 %v579, 0.01
        %v776 = vmul.f32 %v724, 0.01
        %v777 = vmul.f32 %v583, 0.01
        %v778 = vmul.f32 %v585, 0.01
        %v779 = vmul.f32 %v729, 0.01
        %v780 = vmax.f32 %v493, %v732
        %v781 = vmax.f32 %v495, %v733
        %v782 = vmax.f32 %v654, %v734
        %v783 = vmax.f32 %v499, %v735
        %v784 = vmax.f32 %v501, %v736
        %v785 = vmax.f32 %v659, %v737
        %v786 = vmax.f32 %v505, %v738
        %v787 = vmax.f32 %v507, %v739
        %v788 = vmax.f32 %v664, %v740
        %v789 = vmax.f32 %v511, %v741
        %v790 = vmax.f32 %v513, %v742
        %v791 = vmax.f32 %v669, %v743
        %v792 = vmax.f32 %v517, %v744
        %v793 = vmax.f32 %v519, %v745
        %v794 = vmax.f32 %v674, %v746
        %v795 = vmax.f32 %v523, %v747
        %v796 = vmax.f32 %v525, %v748
        %v797 = vmax.f32 %v679, %v749
        %v798 = vmax.f32 %v529, %v750
        %v799 = vmax.f32 %v531, %v751
        %v800 = vmax.f32 %v684, %v752
        %v801 = vmax.f32 %v535, %v753
        %v802 = vmax.f32 %v537, %v754
        %v803 = vmax.f32 %v689, %v755
        %v804 = vmax.f32 %v541, %v756
        %v805 = vmax.f32 %v543, %v757
        %v806 = vmax.f32 %v694, %v758
        %v807 = vmax.f32 %v547, %v759
        %v808 = vmax.f32 %v549, %v760
        %v809 = vmax.f32 %v699, %v761
        %v810 = vmax.f32 %v553, %v762
        %v811 = vmax.f32 %v555, %v763
        %v812 = vmax.f32 %v704, %v764
        %v813 = vmax.f32 %v559, %v765
        %v814 = vmax.f32 %v561, %v766
        %v815 = vmax.f32 %v709, %v767
        %v816 = vmax.f32 %v565, %v768
        %v817 = vmax.f32 %v567, %v769
        %v818 = vmax.f32 %v714, %v770
        %v819 = vmax.f32 %v571, %v771
        %v820 = vmax.f32 %v573, %v772
        %v821 = vmax.f32 %v719, %v773
        %v822 = vmax.f32 %v577, %v774
        %v823 = vmax.f32 %v579, %v775
        %v824 = vmax.f32 %v724, %v776
        %v825 = vmax.f32 %v583, %v777
        %v826 = vmax.f32 %v585, %v778
        %v827 = vmax.f32 %v729, %v779
        %v828 = vld [vmem:[#allocation6] sm:$0xff]
        %v829 = vld [vmem:[#allocation6 + $0x8] sm:$0xff]
        %v830 = vld [vmem:[#allocation6 + $0x10] sm:$0xff]
        %v831 = vld [vmem:[#allocation6 + $0x18] sm:$0xff]
        %v832 = vld [vmem:[#allocation6 + $0x20] sm:$0xff]
        %v833 = vld [vmem:[#allocation6 + $0x28] sm:$0xff]
        %v834 = vld [vmem:[#allocation6 + $0x30] sm:$0xff]
        %v835 = vld [vmem:[#allocation6 + $0x38] sm:$0xff]
        %v836 = vld [vmem:[#allocation6 + $0x40] sm:$0xff]
        %v837 = vld [vmem:[#allocation6 + $0x48] sm:$0xff]
        %v838 = vld [vmem:[#allocation6 + $0x50] sm:$0xff]
        %v839 = vld [vmem:[#allocation6 + $0x58] sm:$0xff]
        %v840 = vld [vmem:[#allocation6 + $0x60] sm:$0xff]
        %v841 = vld [vmem:[#allocation6 + $0x68] sm:$0xff]
        %v842 = vld [vmem:[#allocation6 + $0x70] sm:$0xff]
        %v843 = vld [vmem:[#allocation6 + $0x78] sm:$0xff]
        %v844 = vld [vmem:[#allocation6 + $0x80] sm:$0xff]
        %v845 = vld [vmem:[#allocation6 + $0x88] sm:$0xff]
        %v846 = vld [vmem:[#allocation6 + $0x90] sm:$0xff]
        %v847 = vld [vmem:[#allocation6 + $0x98] sm:$0xff]
        %v848 = vld [vmem:[#allocation6 + $0xa0] sm:$0xff]
        %v849 = vld [vmem:[#allocation6 + $0xa8] sm:$0xff]
        %v850 = vld [vmem:[#allocation6 + $0xb0] sm:$0xff]
        %v851 = vld [vmem:[#allocation6 + $0xb8] sm:$0xff]
        %v852 = vld [vmem:[#allocation6 + $0xc0] sm:$0xff]
        %v853 = vld [vmem:[#allocation6 + $0xc8] sm:$0xff]
        %v854 = vld [vmem:[#allocation6 + $0xd0] sm:$0xff]
        %v855 = vld [vmem:[#allocation6 + $0xd8] sm:$0xff]
        %v856 = vld [vmem:[#allocation6 + $0xe0] sm:$0xff]
        %v857 = vld [vmem:[#allocation6 + $0xe8] sm:$0xff]
        %v858 = vld [vmem:[#allocation6 + $0xf0] sm:$0xff]
        %v859 = vld [vmem:[#allocation6 + $0xf8] sm:$0xff]
        %v860 = vld [vmem:[#allocation6 + $0x100] sm:$0xff]
        %v861 = vld [vmem:[#allocation6 + $0x108] sm:$0xff]
        %v862 = vld [vmem:[#allocation6 + $0x110] sm:$0xff]
        %v863 = vld [vmem:[#allocation6 + $0x118] sm:$0xff]
        %v864 = vld [vmem:[#allocation6 + $0x120] sm:$0xff]
        %v865 = vld [vmem:[#allocation6 + $0x128] sm:$0xff]
        %v866 = vld [vmem:[#allocation6 + $0x130] sm:$0xff]
        %v867 = vld [vmem:[#allocation6 + $0x138] sm:$0xff]
        %v868 = vld [vmem:[#allocation6 + $0x140] sm:$0xff]
        %v869 = vld [vmem:[#allocation6 + $0x148] sm:$0xff]
        %v870 = vld [vmem:[#allocation6 + $0x150] sm:$0xff]
        %v871 = vld [vmem:[#allocation6 + $0x158] sm:$0xff]
        %v872 = vld [vmem:[#allocation6 + $0x160] sm:$0xff]
        %v873 = vld [vmem:[#allocation6 + $0x168] sm:$0xff]
        %v874 = vld [vmem:[#allocation6 + $0x170] sm:$0xff]
        %v875 = vld [vmem:[#allocation6 + $0x178] sm:$0xff]
        %v876 = vld [vmem:[#allocation6 + $0x180] sm:$0xff]
        %v877 = vld [vmem:[#allocation6 + $0x188] sm:$0xff]
        %v878 = vld [vmem:[#allocation6 + $0x190] sm:$0xff]
        %v879 = vld [vmem:[#allocation6 + $0x198] sm:$0xff]
        %v880 = vld [vmem:[#allocation6 + $0x1a0] sm:$0xff]
        %v881 = vld [vmem:[#allocation6 + $0x1a8] sm:$0xff]
        %v882 = vld [vmem:[#allocation6 + $0x1b0] sm:$0xff]
        %v883 = vld [vmem:[#allocation6 + $0x1b8] sm:$0xff]
        %v884 = vld [vmem:[#allocation6 + $0x1c0] sm:$0xff]
        %v885 = vld [vmem:[#allocation6 + $0x1c8] sm:$0xff]
        %v886 = vld [vmem:[#allocation6 + $0x1d0] sm:$0xff]
        %v887 = vld [vmem:[#allocation6 + $0x1d8] sm:$0xff]
        %v888 = vld [vmem:[#allocation6 + $0x1e0] sm:$0xff]
        %v889 = vld [vmem:[#allocation6 + $0x1e8] sm:$0xff]
        %v890 = vld [vmem:[#allocation6 + $0x1f0] sm:$0xff]
        %v891 = vld [vmem:[#allocation6 + $0x1f8] sm:$0xff]
        %v892 = vld [vmem:[#allocation6 + $0x200] sm:$0xff]
        %v893 = vld [vmem:[#allocation6 + $0x208] sm:$0xff]
        %v894 = vld [vmem:[#allocation6 + $0x210] sm:$0xff]
        %v895 = vld [vmem:[#allocation6 + $0x218] sm:$0xff]
        %v896 = vld [vmem:[#allocation6 + $0x220] sm:$0xff]
        %v897 = vld [vmem:[#allocation6 + $0x228] sm:$0xff]
        %v898 = vld [vmem:[#allocation6 + $0x230] sm:$0xff]
        %v899 = vld [vmem:[#allocation6 + $0x238] sm:$0xff]
        %v900 = vld [vmem:[#allocation6 + $0x240] sm:$0xff]
        %v901 = vld [vmem:[#allocation6 + $0x248] sm:$0xff]
        %v902 = vld [vmem:[#allocation6 + $0x250] sm:$0xff]
        %v903 = vld [vmem:[#allocation6 + $0x258] sm:$0xff]
        %v904 = vld [vmem:[#allocation6 + $0x260] sm:$0xff]
        %v905 = vld [vmem:[#allocation6 + $0x268] sm:$0xff]
        %v906 = vld [vmem:[#allocation6 + $0x270] sm:$0xff]
        %v907 = vld [vmem:[#allocation6 + $0x278] sm:$0xff]
        %v908 = vld [vmem:[#allocation6 + $0x280] sm:$0xff]
        %v909 = vld [vmem:[#allocation6 + $0x288] sm:$0xff]
        %v910 = vld [vmem:[#allocation6 + $0x290] sm:$0xff]
        %v911 = vld [vmem:[#allocation6 + $0x298] sm:$0xff]
        %v912 = vld [vmem:[#allocation6 + $0x2a0] sm:$0xff]
        %v913 = vld [vmem:[#allocation6 + $0x2a8] sm:$0xff]
        %v914 = vld [vmem:[#allocation6 + $0x2b0] sm:$0xff]
        %v915 = vld [vmem:[#allocation6 + $0x2b8] sm:$0xff]
        %v916 = vld [vmem:[#allocation6 + $0x2c0] sm:$0xff]
        %v917 = vld [vmem:[#allocation6 + $0x2c8] sm:$0xff]
        %v918 = vld [vmem:[#allocation6 + $0x2d0] sm:$0xff]
        %v919 = vld [vmem:[#allocation6 + $0x2d8] sm:$0xff]
        %v920 = vld [vmem:[#allocation6 + $0x2e0] sm:$0xff]
        %v921 = vld [vmem:[#allocation6 + $0x2e8] sm:$0xff]
        %v922 = vld [vmem:[#allocation6 + $0x2f0] sm:$0xff]
        %v923 = vld [vmem:[#allocation6 + $0x2f8] sm:$0xff]
        %v924 = vld [vmem:[%s4] sm:$0x3]
        %v926 = vlaneseq
        %v927 = vshrl.u32 %v926, 7
        %v928 = vsub.s32 0, %v927
        %v929 = vrot.slane %v924, %v928
        %v930 = vlaneseq
        %v931 = vshrl.u32 %v930, 7
        %v932 = vsub.s32 1, %v931
        %v933 = vrot.slane %v924, %v932
        %936 = vmatprep.subr.mxu0 %v829
        %937 = vmatpush1.msra.mxu0 %v828
        %938 = vmatprep.subr.mxu0 %v831
        %939 = vmatpush1.msra.mxu0 %v830
        %940 = vmatprep.subr.mxu0 %v833
        %941 = vmatpush1.msra.mxu0 %v832
        %942 = vmatprep.subr.mxu0 %v835
        %943 = vmatpush1.msra.mxu0 %v834
        %944 = vmatprep.subr.mxu0 %v837
        %945 = vmatpush1.msra.mxu0 %v836
        %946 = vmatprep.subr.mxu0 %v839
        %947 = vmatpush1.msra.mxu0 %v838
        %948 = vmatprep.subr.mxu0 %v841
        %949 = vmatpush1.msra.mxu0 %v840
        %950 = vmatprep.subr.mxu0 %v843
        %951 = vmatpush1.msra.mxu0 %v842
        %952 = vmatprep.subr.mxu0 %v845
        %953 = vmatpush1.msra.mxu0 %v844
        %954 = vmatprep.subr.mxu0 %v847
        %955 = vmatpush1.msra.mxu0 %v846
        %956 = vmatprep.subr.mxu0 %v849
        %957 = vmatpush1.msra.mxu0 %v848
        %958 = vmatprep.subr.mxu0 %v851
        %959 = vmatpush1.msra.mxu0 %v850
        %960 = vmatprep.subr.mxu0 %v853
        %961 = vmatpush1.msra.mxu0 %v852
        %962 = vmatprep.subr.mxu0 %v855
        %963 = vmatpush1.msra.mxu0 %v854
        %964 = vmatprep.subr.mxu0 %v857
        %965 = vmatpush1.msra.mxu0 %v856
        %966 = vmatprep.subr.mxu0 %v859
        %967 = vmatpush1.msra.mxu0 %v858
        %968 = vmatprep.subr.mxu0 %v861
        %969 = vmatpush1.msra.mxu0 %v860
        %970 = vmatprep.subr.mxu0 %v863
        %971 = vmatpush1.msra.mxu0 %v862
        %972 = vmatprep.subr.mxu0 %v865
        %973 = vmatpush1.msra.mxu0 %v864
        %974 = vmatprep.subr.mxu0 %v867
        %975 = vmatpush1.msra.mxu0 %v866
        %976 = vmatprep.subr.mxu0 %v869
        %977 = vmatpush1.msra.mxu0 %v868
        %978 = vmatprep.subr.mxu0 %v871
        %979 = vmatpush1.msra.mxu0 %v870
        %980 = vmatprep.subr.mxu0 %v873
        %981 = vmatpush1.msra.mxu0 %v872
        %982 = vmatprep.subr.mxu0 %v875
        %983 = vmatpush1.msra.mxu0 %v874
        %984 = vmatprep.subr.mxu0 %v877
        %985 = vmatpush1.msra.mxu0 %v876
        %986 = vmatprep.subr.mxu0 %v879
        %987 = vmatpush1.msra.mxu0 %v878
        %988 = vmatprep.subr.mxu0 %v881
        %989 = vmatpush1.msra.mxu0 %v880
        %990 = vmatprep.subr.mxu0 %v883
        %991 = vmatpush1.msra.mxu0 %v882
        %992 = vmatprep.subr.mxu0 %v885
        %993 = vmatpush1.msra.mxu0 %v884
        %994 = vmatprep.subr.mxu0 %v887
        %995 = vmatpush1.msra.mxu0 %v886
        %996 = vmatprep.subr.mxu0 %v889
        %997 = vmatpush1.msra.mxu0 %v888
        %998 = vmatprep.subr.mxu0 %v891
        %999 = vmatpush1.msra.mxu0 %v890
        %1000 = vmatprep.mubr.f32.mxu0 %v781
        %1001 = vmatmul.mubr.f32.gmra.mrb[0].mxu0 %v780
        %v1002 = vpop.f32.mrb[0].mxu0
        %v1003 = vadd.f32 %v929, %v1002
        %v1004 = vpop.f32.mrb[0].mxu0
        %v1005 = vadd.f32 %v933, %v1004
        %1006 = vmatprep.mubr.f32.mxu0 %v784
        %1007 = vmatmul.mubr.f32.gmra.mrb[0].mxu0 %v783
        %v1008 = vpop.f32.mrb[0].mxu0
        %v1009 = vadd.f32 %v929, %v1008
        %v1010 = vpop.f32.mrb[0].mxu0
        %v1011 = vadd.f32 %v933, %v1010
        %1012 = vmatprep.mubr.f32.mxu0 %v787
        %1013 = vmatmul.mubr.f32.gmra.mrb[0].mxu0 %v786
        %v1014 = vpop.f32.mrb[0].mxu0
        %v1015 = vadd.f32 %v929, %v1014
        %v1016 = vpop.f32.mrb[0].mxu0
        %v1017 = vadd.f32 %v933, %v1016
        %1018 = vmatprep.mubr.f32.mxu0 %v790
        %1019 = vmatmul.mubr.f32.gmra.mrb[0].mxu0 %v789
        %v1020 = vpop.f32.mrb[0].mxu0
        %v1021 = vadd.f32 %v929, %v1020
        %v1022 = vpop.f32.mrb[0].mxu0
        %v1023 = vadd.f32 %v933, %v1022
        %1024 = vmatprep.mubr.f32.mxu0 %v793
        %1025 = vmatmul.mubr.f32.gmra.mrb[0].mxu0 %v792
        %v1026 = vpop.f32.mrb[0].mxu0
        %v1027 = vadd.f32 %v929, %v1026
        %v1028 = vpop.f32.mrb[0].mxu0
        %v1029 = vadd.f32 %v933, %v1028
        %1030 = vmatprep.mubr.f32.mxu0 %v796
        %1031 = vmatmul.mubr.f32.gmra.mrb[0].mxu0 %v795
        %v1032 = vpop.f32.mrb[0].mxu0
        %v1033 = vadd.f32 %v929, %v1032
        %v1034 = vpop.f32.mrb[0].mxu0
        %v1035 = vadd.f32 %v933, %v1034
        %1036 = vmatprep.mubr.f32.mxu0 %v799
        %1037 = vmatmul.mubr.f32.gmra.mrb[0].mxu0 %v798
        %v1038 = vpop.f32.mrb[0].mxu0
        %v1039 = vadd.f32 %v929, %v1038
        %v1040 = vpop.f32.mrb[0].mxu0
        %v1041 = vadd.f32 %v933, %v1040
        %1042 = vmatprep.mubr.f32.mxu0 %v802
        %1043 = vmatmul.mubr.f32.gmra.mrb[0].mxu0 %v801
        %v1044 = vpop.f32.mrb[0].mxu0
        %v1045 = vadd.f32 %v929, %v1044
        %v1046 = vpop.f32.mrb[0].mxu0
        %v1047 = vadd.f32 %v933, %v1046
        %1048 = vmatprep.mubr.f32.mxu0 %v805
        %1049 = vmatmul.mubr.f32.gmra.mrb[0].mxu0 %v804
        %v1050 = vpop.f32.mrb[0].mxu0
        %v1051 = vadd.f32 %v929, %v1050
        %v1052 = vpop.f32.mrb[0].mxu0
        %v1053 = vadd.f32 %v933, %v1052
        %1054 = vmatprep.mubr.f32.mxu0 %v808
        %1055 = vmatmul.mubr.f32.gmra.mrb[0].mxu0 %v807
        %v1056 = vpop.f32.mrb[0].mxu0
        %v1057 = vadd.f32 %v929, %v1056
        %v1058 = vpop.f32.mrb[0].mxu0
        %v1059 = vadd.f32 %v933, %v1058
        %1060 = vmatprep.mubr.f32.mxu0 %v811
        %1061 = vmatmul.mubr.f32.gmra.mrb[0].mxu0 %v810
        %v1062 = vpop.f32.mrb[0].mxu0
        %v1063 = vadd.f32 %v929, %v1062
        %v1064 = vpop.f32.mrb[0].mxu0
        %v1065 = vadd.f32 %v933, %v1064
        %1066 = vmatprep.mubr.f32.mxu0 %v814
        %1067 = vmatmul.mubr.f32.gmra.mrb[0].mxu0 %v813
        %v1068 = vpop.f32.mrb[0].mxu0
        %v1069 = vadd.f32 %v929, %v1068
        %v1070 = vpop.f32.mrb[0].mxu0
        %v1071 = vadd.f32 %v933, %v1070
        %1072 = vmatprep.mubr.f32.mxu0 %v817
        %1073 = vmatmul.mubr.f32.gmra.mrb[0].mxu0 %v816
        %v1074 = vpop.f32.mrb[0].mxu0
        %v1075 = vadd.f32 %v929, %v1074
        %v1076 = vpop.f32.mrb[0].mxu0
        %v1077 = vadd.f32 %v933, %v1076
        %1078 = vmatprep.mubr.f32.mxu0 %v820
        %1079 = vmatmul.mubr.f32.gmra.mrb[0].mxu0 %v819
        %v1080 = vpop.f32.mrb[0].mxu0
        %v1081 = vadd.f32 %v929, %v1080
        %v1082 = vpop.f32.mrb[0].mxu0
        %v1083 = vadd.f32 %v933, %v1082
        %1084 = vmatprep.mubr.f32.mxu0 %v823
        %1085 = vmatmul.mubr.f32.gmra.mrb[0].mxu0 %v822
        %v1086 = vpop.f32.mrb[0].mxu0
        %v1087 = vadd.f32 %v929, %v1086
        %v1088 = vpop.f32.mrb[0].mxu0
        %v1089 = vadd.f32 %v933, %v1088
        %1090 = vmatprep.mubr.f32.mxu0 %v826
        %1091 = vmatmul.mubr.f32.gmra.mrb[0].mxu0 %v825
        %v1092 = vpop.f32.mrb[0].mxu0
        %v1093 = vadd.f32 %v929, %v1092
        %v1094 = vpop.f32.mrb[0].mxu0
        %v1095 = vadd.f32 %v933, %v1094
        %1096 = vdwg.mxu0
        %1097 = vmatprep.subr.mxu0 %v893
        %1098 = vmatpush1.msra.mxu0 %v892
        %1099 = vmatprep.subr.mxu0 %v895
        %1100 = vmatpush1.msra.mxu0 %v894
        %1101 = vmatprep.subr.mxu0 %v897
        %1102 = vmatpush1.msra.mxu0 %v896
        %1103 = vmatprep.subr.mxu0 %v899
        %1104 = vmatpush1.msra.mxu0 %v898
        %1105 = vmatprep.subr.mxu0 %v901
        %1106 = vmatpush1.msra.mxu0 %v900
        %1107 = vmatprep.subr.mxu0 %v903
        %1108 = vmatpush1.msra.mxu0 %v902
        %1109 = vmatprep.subr.mxu0 %v905
        %1110 = vmatpush1.msra.mxu0 %v904
        %1111 = vmatprep.subr.mxu0 %v907
        %1112 = vmatpush1.msra.mxu0 %v906
        %1113 = vmatprep.subr.mxu0 %v909
        %1114 = vmatpush1.msra.mxu0 %v908
        %1115 = vmatprep.subr.mxu0 %v911
        %1116 = vmatpush1.msra.mxu0 %v910
        %1117 = vmatprep.subr.mxu0 %v913
        %1118 = vmatpush1.msra.mxu0 %v912
        %1119 = vmatprep.subr.mxu0 %v915
        %1120 = vmatpush1.msra.mxu0 %v914
        %1121 = vmatprep.subr.mxu0 %v917
        %1122 = vmatpush1.msra.mxu0 %v916
        %1123 = vmatprep.subr.mxu0 %v919
        %1124 = vmatpush1.msra.mxu0 %v918
        %1125 = vmatprep.subr.mxu0 %v921
        %1126 = vmatpush1.msra.mxu0 %v920
        %1127 = vmatprep.subr.mxu0 %v923
        %1128 = vmatpush1.msra.mxu0 %v922
        %1129 = vmatprep.subr.mxu0 0.0
        %1130 = vmatpush1.msra.mxu0 0.0
        %1131 = vmatprep.subr.mxu0 0.0
        %1132 = vmatpush1.msra.mxu0 0.0
        %1133 = vmatprep.subr.mxu0 0.0
        %1134 = vmatpush1.msra.mxu0 0.0
        %1135 = vmatprep.subr.mxu0 0.0
        %1136 = vmatpush1.msra.mxu0 0.0
        %1137 = vmatprep.subr.mxu0 0.0
        %1138 = vmatpush1.msra.mxu0 0.0
        %1139 = vmatprep.subr.mxu0 0.0
        %1140 = vmatpush1.msra.mxu0 0.0
        %1141 = vmatprep.subr.mxu0 0.0
        %1142 = vmatpush1.msra.mxu0 0.0
        %1143 = vmatprep.subr.mxu0 0.0
        %1144 = vmatpush1.msra.mxu0 0.0
        %1145 = vmatprep.subr.mxu0 0.0
        %1146 = vmatpush1.msra.mxu0 0.0
        %1147 = vmatprep.subr.mxu0 0.0
        %1148 = vmatpush1.msra.mxu0 0.0
        %1149 = vmatprep.subr.mxu0 0.0
        %1150 = vmatpush1.msra.mxu0 0.0
        %1151 = vmatprep.subr.mxu0 0.0
        %1152 = vmatpush1.msra.mxu0 0.0
        %1153 = vmatprep.subr.mxu0 0.0
        %1154 = vmatpush1.msra.mxu0 0.0
        %1155 = vmatprep.subr.mxu0 0.0
        %1156 = vmatpush1.msra.mxu0 0.0
        %1157 = vmatprep.subr.mxu0 0.0
        %1158 = vmatpush1.msra.mxu0 0.0
        %1159 = vmatprep.subr.mxu0 0.0
        %1160 = vmatpush1.msra.mxu0 0.0
        %1161 = vmatprep.mubr.f32.mxu0 0.0
        %1162 = vmatmul.mubr.f32.gmra.mrb[0].mxu0 %v782
        %v1163 = vpop.f32.mrb[0].mxu0
        %v1164 = vadd.f32 %v1003, %v1163
        %v1165 = vpop.f32.mrb[0].mxu0
        %v1166 = vadd.f32 %v1005, %v1165
        %1167 = vmatprep.mubr.f32.mxu0 0.0
        %1168 = vmatmul.mubr.f32.gmra.mrb[0].mxu0 %v785
        %v1169 = vpop.f32.mrb[0].mxu0
        %v1170 = vadd.f32 %v1009, %v1169
        %v1171 = vpop.f32.mrb[0].mxu0
        %v1172 = vadd.f32 %v1011, %v1171
        %1173 = vmatprep.mubr.f32.mxu0 0.0
        %1174 = vmatmul.mubr.f32.gmra.mrb[0].mxu0 %v788
        %v1175 = vpop.f32.mrb[0].mxu0
        %v1176 = vadd.f32 %v1015, %v1175
        %v1177 = vpop.f32.mrb[0].mxu0
        %v1178 = vadd.f32 %v1017, %v1177
        %1179 = vmatprep.mubr.f32.mxu0 0.0
        %1180 = vmatmul.mubr.f32.gmra.mrb[0].mxu0 %v791
        %v1181 = vpop.f32.mrb[0].mxu0
        %v1182 = vadd.f32 %v1021, %v1181
        %v1183 = vpop.f32.mrb[0].mxu0
        %v1184 = vadd.f32 %v1023, %v1183
        %1185 = vmatprep.mubr.f32.mxu0 0.0
        %1186 = vmatmul.mubr.f32.gmra.mrb[0].mxu0 %v794
        %v1187 = vpop.f32.mrb[0].mxu0
        %v1188 = vadd.f32 %v1027, %v1187
        %v1189 = vpop.f32.mrb[0].mxu0
        %v1190 = vadd.f32 %v1029, %v1189
        %1191 = vmatprep.mubr.f32.mxu0 0.0
        %1192 = vmatmul.mubr.f32.gmra.mrb[0].mxu0 %v797
        %v1193 = vpop.f32.mrb[0].mxu0
        %v1194 = vadd.f32 %v1033, %v1193
        %v1195 = vpop.f32.mrb[0].mxu0
        %v1196 = vadd.f32 %v1035, %v1195
        %1197 = vmatprep.mubr.f32.mxu0 0.0
        %1198 = vmatmul.mubr.f32.gmra.mrb[0].mxu0 %v800
        %v1199 = vpop.f32.mrb[0].mxu0
        %v1200 = vadd.f32 %v1039, %v1199
        %v1201 = vpop.f32.mrb[0].mxu0
        %v1202 = vadd.f32 %v1041, %v1201
        %1203 = vmatprep.mubr.f32.mxu0 0.0
        %1204 = vmatmul.mubr.f32.gmra.mrb[0].mxu0 %v803
        %v1205 = vpop.f32.mrb[0].mxu0
        %v1206 = vadd.f32 %v1045, %v1205
        %v1207 = vpop.f32.mrb[0].mxu0
        %v1208 = vadd.f32 %v1047, %v1207
        %1209 = vmatprep.mubr.f32.mxu0 0.0
        %1210 = vmatmul.mubr.f32.gmra.mrb[0].mxu0 %v806
        %v1211 = vpop.f32.mrb[0].mxu0
        %v1212 = vadd.f32 %v1051, %v1211
        %v1213 = vpop.f32.mrb[0].mxu0
        %v1214 = vadd.f32 %v1053, %v1213
        %1215 = vmatprep.mubr.f32.mxu0 0.0
        %1216 = vmatmul.mubr.f32.gmra.mrb[0].mxu0 %v809
        %v1217 = vpop.f32.mrb[0].mxu0
        %v1218 = vadd.f32 %v1057, %v1217
        %v1219 = vpop.f32.mrb[0].mxu0
        %v1220 = vadd.f32 %v1059, %v1219
        %1221 = vmatprep.mubr.f32.mxu0 0.0
        %1222 = vmatmul.mubr.f32.gmra.mrb[0].mxu0 %v812
        %v1223 = vpop.f32.mrb[0].mxu0
        %v1224 = vadd.f32 %v1063, %v1223
        %v1225 = vpop.f32.mrb[0].mxu0
        %v1226 = vadd.f32 %v1065, %v1225
        %1227 = vmatprep.mubr.f32.mxu0 0.0
        %1228 = vmatmul.mubr.f32.gmra.mrb[0].mxu0 %v815
        %v1229 = vpop.f32.mrb[0].mxu0
        %v1230 = vadd.f32 %v1069, %v1229
        %v1231 = vpop.f32.mrb[0].mxu0
        %v1232 = vadd.f32 %v1071, %v1231
        %1233 = vmatprep.mubr.f32.mxu0 0.0
        %1234 = vmatmul.mubr.f32.gmra.mrb[0].mxu0 %v818
        %v1235 = vpop.f32.mrb[0].mxu0
        %v1236 = vadd.f32 %v1075, %v1235
        %v1237 = vpop.f32.mrb[0].mxu0
        %v1238 = vadd.f32 %v1077, %v1237
        %1239 = vmatprep.mubr.f32.mxu0 0.0
        %1240 = vmatmul.mubr.f32.gmra.mrb[0].mxu0 %v821
        %v1241 = vpop.f32.mrb[0].mxu0
        %v1242 = vadd.f32 %v1081, %v1241
        %v1243 = vpop.f32.mrb[0].mxu0
        %v1244 = vadd.f32 %v1083, %v1243
        %1245 = vmatprep.mubr.f32.mxu0 0.0
        %1246 = vmatmul.mubr.f32.gmra.mrb[0].mxu0 %v824
        %v1247 = vpop.f32.mrb[0].mxu0
        %v1248 = vadd.f32 %v1087, %v1247
        %v1249 = vpop.f32.mrb[0].mxu0
        %v1250 = vadd.f32 %v1089, %v1249
        %1251 = vmatprep.mubr.f32.mxu0 0.0
        %1252 = vmatmul.mubr.f32.gmra.mrb[0].mxu0 %v827
        %v1253 = vpop.f32.mrb[0].mxu0
        %v1254 = vadd.f32 %v1093, %v1253
        %v1255 = vpop.f32.mrb[0].mxu0
        %v1256 = vadd.f32 %v1095, %v1255
        %1257 = vdwg.mxu0
        %v1258 = vmul.f32 %v1164, 0.01
        %v1259 = vmul.f32 %v1166, 0.01
        %v1260 = vmul.f32 %v1170, 0.01
        %v1261 = vmul.f32 %v1172, 0.01
        %v1262 = vmul.f32 %v1176, 0.01
        %v1263 = vmul.f32 %v1178, 0.01
        %v1264 = vmul.f32 %v1182, 0.01
        %v1265 = vmul.f32 %v1184, 0.01
        %v1266 = vmul.f32 %v1188, 0.01
        %v1267 = vmul.f32 %v1190, 0.01
        %v1268 = vmul.f32 %v1194, 0.01
        %v1269 = vmul.f32 %v1196, 0.01
        %v1270 = vmul.f32 %v1200, 0.01
        %v1271 = vmul.f32 %v1202, 0.01
        %v1272 = vmul.f32 %v1206, 0.01
        %v1273 = vmul.f32 %v1208, 0.01
        %v1274 = vmul.f32 %v1212, 0.01
        %v1275 = vmul.f32 %v1214, 0.01
        %v1276 = vmul.f32 %v1218, 0.01
        %v1277 = vmul.f32 %v1220, 0.01
        %v1278 = vmul.f32 %v1224, 0.01
        %v1279 = vmul.f32 %v1226, 0.01
        %v1280 = vmul.f32 %v1230, 0.01
        %v1281 = vmul.f32 %v1232, 0.01
        %v1282 = vmul.f32 %v1236, 0.01
        %v1283 = vmul.f32 %v1238, 0.01
        %v1284 = vmul.f32 %v1242, 0.01
        %v1285 = vmul.f32 %v1244, 0.01
        %v1286 = vmul.f32 %v1248, 0.01
        %v1287 = vmul.f32 %v1250, 0.01
        %v1288 = vmul.f32 %v1254, 0.01
        %v1289 = vmul.f32 %v1256, 0.01
        %v1290 = vmax.f32 %v1164, %v1258
        %v1291 = vmax.f32 %v1166, %v1259
        %v1292 = vmax.f32 %v1170, %v1260
        %v1293 = vmax.f32 %v1172, %v1261
        %v1294 = vmax.f32 %v1176, %v1262
        %v1295 = vmax.f32 %v1178, %v1263
        %v1296 = vmax.f32 %v1182, %v1264
        %v1297 = vmax.f32 %v1184, %v1265
        %v1298 = vmax.f32 %v1188, %v1266
        %v1299 = vmax.f32 %v1190, %v1267
        %v1300 = vmax.f32 %v1194, %v1268
        %v1301 = vmax.f32 %v1196, %v1269
        %v1302 = vmax.f32 %v1200, %v1270
        %v1303 = vmax.f32 %v1202, %v1271
        %v1304 = vmax.f32 %v1206, %v1272
        %v1305 = vmax.f32 %v1208, %v1273
        %v1306 = vmax.f32 %v1212, %v1274
        %v1307 = vmax.f32 %v1214, %v1275
        %v1308 = vmax.f32 %v1218, %v1276
        %v1309 = vmax.f32 %v1220, %v1277
        %v1310 = vmax.f32 %v1224, %v1278
        %v1311 = vmax.f32 %v1226, %v1279
        %v1312 = vmax.f32 %v1230, %v1280
        %v1313 = vmax.f32 %v1232, %v1281
        %v1314 = vmax.f32 %v1236, %v1282
        %v1315 = vmax.f32 %v1238, %v1283
        %v1316 = vmax.f32 %v1242, %v1284
        %v1317 = vmax.f32 %v1244, %v1285
        %v1318 = vmax.f32 %v1248, %v1286
        %v1319 = vmax.f32 %v1250, %v1287
        %v1320 = vmax.f32 %v1254, %v1288
        %v1321 = vmax.f32 %v1256, %v1289
        %v1322 = vld [vmem:[#allocation7] sm:$0xff]
        %v1323 = vld [vmem:[#allocation7 + $0x8] sm:$0xff]
        %v1324 = vld [vmem:[#allocation7 + $0x10] sm:$0xff]
        %v1325 = vld [vmem:[#allocation7 + $0x18] sm:$0xff]
        %v1326 = vld [vmem:[#allocation7 + $0x20] sm:$0xff]
        %v1327 = vld [vmem:[#allocation7 + $0x28] sm:$0xff]
        %v1328 = vld [vmem:[#allocation7 + $0x30] sm:$0xff]
        %v1329 = vld [vmem:[#allocation7 + $0x38] sm:$0xff]
        %v1330 = vld [vmem:[#allocation7 + $0x40] sm:$0xff]
        %v1331 = vld [vmem:[#allocation7 + $0x48] sm:$0xff]
        %v1332 = vld [vmem:[#allocation7 + $0x50] sm:$0xff]
        %v1333 = vld [vmem:[#allocation7 + $0x58] sm:$0xff]
        %v1334 = vld [vmem:[#allocation7 + $0x60] sm:$0xff]
        %v1335 = vld [vmem:[#allocation7 + $0x68] sm:$0xff]
        %v1336 = vld [vmem:[#allocation7 + $0x70] sm:$0xff]
        %v1337 = vld [vmem:[#allocation7 + $0x78] sm:$0xff]
        %v1338 = vld [vmem:[#allocation7 + $0x80] sm:$0xff]
        %v1339 = vld [vmem:[#allocation7 + $0x88] sm:$0xff]
        %v1340 = vld [vmem:[#allocation7 + $0x90] sm:$0xff]
        %v1341 = vld [vmem:[#allocation7 + $0x98] sm:$0xff]
        %v1342 = vld [vmem:[#allocation7 + $0xa0] sm:$0xff]
        %v1343 = vld [vmem:[#allocation7 + $0xa8] sm:$0xff]
        %v1344 = vld [vmem:[#allocation7 + $0xb0] sm:$0xff]
        %v1345 = vld [vmem:[#allocation7 + $0xb8] sm:$0xff]
        %v1346 = vld [vmem:[#allocation7 + $0xc0] sm:$0xff]
        %v1347 = vld [vmem:[#allocation7 + $0xc8] sm:$0xff]
        %v1348 = vld [vmem:[#allocation7 + $0xd0] sm:$0xff]
        %v1349 = vld [vmem:[#allocation7 + $0xd8] sm:$0xff]
        %v1350 = vld [vmem:[#allocation7 + $0xe0] sm:$0xff]
        %v1351 = vld [vmem:[#allocation7 + $0xe8] sm:$0xff]
        %v1352 = vld [vmem:[#allocation7 + $0xf0] sm:$0xff]
        %v1353 = vld [vmem:[#allocation7 + $0xf8] sm:$0xff]
        %v1354 = vld [vmem:[%s6] sm:$0x1]
        %v1356 = vlaneseq
        %v1357 = vshrl.u32 %v1356, 7
        %v1358 = vsub.s32 0, %v1357
        %v1359 = vrot.slane %v1354, %v1358
        %1361 = vmatprep.subr.mxu0 0.0
        %1362 = vmatpush1.msra.mxu0 %v1322
        %1363 = vmatprep.subr.mxu0 0.0
        %1364 = vmatpush1.msra.mxu0 %v1323
        %1365 = vmatprep.subr.mxu0 0.0
        %1366 = vmatpush1.msra.mxu0 %v1324
        %1367 = vmatprep.subr.mxu0 0.0
        %1368 = vmatpush1.msra.mxu0 %v1325
        %1369 = vmatprep.subr.mxu0 0.0
        %1370 = vmatpush1.msra.mxu0 %v1326
        %1371 = vmatprep.subr.mxu0 0.0
        %1372 = vmatpush1.msra.mxu0 %v1327
        %1373 = vmatprep.subr.mxu0 0.0
        %1374 = vmatpush1.msra.mxu0 %v1328
        %1375 = vmatprep.subr.mxu0 0.0
        %1376 = vmatpush1.msra.mxu0 %v1329
        %1377 = vmatprep.subr.mxu0 0.0
        %1378 = vmatpush1.msra.mxu0 %v1330
        %1379 = vmatprep.subr.mxu0 0.0
        %1380 = vmatpush1.msra.mxu0 %v1331
        %1381 = vmatprep.subr.mxu0 0.0
        %1382 = vmatpush1.msra.mxu0 %v1332
        %1383 = vmatprep.subr.mxu0 0.0
        %1384 = vmatpush1.msra.mxu0 %v1333
        %1385 = vmatprep.subr.mxu0 0.0
        %1386 = vmatpush1.msra.mxu0 %v1334
        %1387 = vmatprep.subr.mxu0 0.0
        %1388 = vmatpush1.msra.mxu0 %v1335
        %1389 = vmatprep.subr.mxu0 0.0
        %1390 = vmatpush1.msra.mxu0 %v1336
        %1391 = vmatprep.subr.mxu0 0.0
        %1392 = vmatpush1.msra.mxu0 %v1337
        %1393 = vmatprep.subr.mxu0 0.0
        %1394 = vmatpush1.msra.mxu0 %v1338
        %1395 = vmatprep.subr.mxu0 0.0
        %1396 = vmatpush1.msra.mxu0 %v1339
        %1397 = vmatprep.subr.mxu0 0.0
        %1398 = vmatpush1.msra.mxu0 %v1340
        %1399 = vmatprep.subr.mxu0 0.0
        %1400 = vmatpush1.msra.mxu0 %v1341
        %1401 = vmatprep.subr.mxu0 0.0
        %1402 = vmatpush1.msra.mxu0 %v1342
        %1403 = vmatprep.subr.mxu0 0.0
        %1404 = vmatpush1.msra.mxu0 %v1343
        %1405 = vmatprep.subr.mxu0 0.0
        %1406 = vmatpush1.msra.mxu0 %v1344
        %1407 = vmatprep.subr.mxu0 0.0
        %1408 = vmatpush1.msra.mxu0 %v1345
        %1409 = vmatprep.subr.mxu0 0.0
        %1410 = vmatpush1.msra.mxu0 %v1346
        %1411 = vmatprep.subr.mxu0 0.0
        %1412 = vmatpush1.msra.mxu0 %v1347
        %1413 = vmatprep.subr.mxu0 0.0
        %1414 = vmatpush1.msra.mxu0 %v1348
        %1415 = vmatprep.subr.mxu0 0.0
        %1416 = vmatpush1.msra.mxu0 %v1349
        %1417 = vmatprep.subr.mxu0 0.0
        %1418 = vmatpush1.msra.mxu0 %v1350
        %1419 = vmatprep.subr.mxu0 0.0
        %1420 = vmatpush1.msra.mxu0 %v1351
        %1421 = vmatprep.subr.mxu0 0.0
        %1422 = vmatpush1.msra.mxu0 %v1352
        %1423 = vmatprep.subr.mxu0 0.0
        %1424 = vmatpush1.msra.mxu0 %v1353
        %1425 = vmatprep.mubr.f32.mxu0 %v1291
        %1426 = vmatmul.mubr.f32.gmra.mrb[0].mxu0 %v1290
        %v1427 = vpop.f32.mrb[0].mxu0
        %v1428 = vadd.f32 %v1359, %v1427
        %v1429 = vpop.f32.mrb[0].mxu0
        %1430 = vmatprep.mubr.f32.mxu0 %v1293
        %1431 = vmatmul.mubr.f32.gmra.mrb[0].mxu0 %v1292
        %v1432 = vpop.f32.mrb[0].mxu0
        %v1433 = vadd.f32 %v1359, %v1432
        %v1434 = vpop.f32.mrb[0].mxu0
        %1435 = vmatprep.mubr.f32.mxu0 %v1295
        %1436 = vmatmul.mubr.f32.gmra.mrb[0].mxu0 %v1294
        %v1437 = vpop.f32.mrb[0].mxu0
        %v1438 = vadd.f32 %v1359, %v1437
        %v1439 = vpop.f32.mrb[0].mxu0
        %1440 = vmatprep.mubr.f32.mxu0 %v1297
        %1441 = vmatmul.mubr.f32.gmra.mrb[0].mxu0 %v1296
        %v1442 = vpop.f32.mrb[0].mxu0
        %v1443 = vadd.f32 %v1359, %v1442
        %v1444 = vpop.f32.mrb[0].mxu0
        %1445 = vmatprep.mubr.f32.mxu0 %v1299
        %1446 = vmatmul.mubr.f32.gmra.mrb[0].mxu0 %v1298
        %v1447 = vpop.f32.mrb[0].mxu0
        %v1448 = vadd.f32 %v1359, %v1447
        %v1449 = vpop.f32.mrb[0].mxu0
        %1450 = vmatprep.mubr.f32.mxu0 %v1301
        %1451 = vmatmul.mubr.f32.gmra.mrb[0].mxu0 %v1300
        %v1452 = vpop.f32.mrb[0].mxu0
        %v1453 = vadd.f32 %v1359, %v1452
        %v1454 = vpop.f32.mrb[0].mxu0
        %1455 = vmatprep.mubr.f32.mxu0 %v1303
        %1456 = vmatmul.mubr.f32.gmra.mrb[0].mxu0 %v1302
        %v1457 = vpop.f32.mrb[0].mxu0
        %v1458 = vadd.f32 %v1359, %v1457
        %v1459 = vpop.f32.mrb[0].mxu0
        %1460 = vmatprep.mubr.f32.mxu0 %v1305
        %1461 = vmatmul.mubr.f32.gmra.mrb[0].mxu0 %v1304
        %v1462 = vpop.f32.mrb[0].mxu0
        %v1463 = vadd.f32 %v1359, %v1462
        %v1464 = vpop.f32.mrb[0].mxu0
        %1465 = vmatprep.mubr.f32.mxu0 %v1307
        %1466 = vmatmul.mubr.f32.gmra.mrb[0].mxu0 %v1306
        %v1467 = vpop.f32.mrb[0].mxu0
        %v1468 = vadd.f32 %v1359, %v1467
        %v1469 = vpop.f32.mrb[0].mxu0
        %1470 = vmatprep.mubr.f32.mxu0 %v1309
        %1471 = vmatmul.mubr.f32.gmra.mrb[0].mxu0 %v1308
        %v1472 = vpop.f32.mrb[0].mxu0
        %v1473 = vadd.f32 %v1359, %v1472
        %v1474 = vpop.f32.mrb[0].mxu0
        %1475 = vmatprep.mubr.f32.mxu0 %v1311
        %1476 = vmatmul.mubr.f32.gmra.mrb[0].mxu0 %v1310
        %v1477 = vpop.f32.mrb[0].mxu0
        %v1478 = vadd.f32 %v1359, %v1477
        %v1479 = vpop.f32.mrb[0].mxu0
        %1480 = vmatprep.mubr.f32.mxu0 %v1313
        %1481 = vmatmul.mubr.f32.gmra.mrb[0].mxu0 %v1312
        %v1482 = vpop.f32.mrb[0].mxu0
        %v1483 = vadd.f32 %v1359, %v1482
        %v1484 = vpop.f32.mrb[0].mxu0
        %1485 = vmatprep.mubr.f32.mxu0 %v1315
        %1486 = vmatmul.mubr.f32.gmra.mrb[0].mxu0 %v1314
        %v1487 = vpop.f32.mrb[0].mxu0
        %v1488 = vadd.f32 %v1359, %v1487
        %v1489 = vpop.f32.mrb[0].mxu0
        %1490 = vmatprep.mubr.f32.mxu0 %v1317
        %1491 = vmatmul.mubr.f32.gmra.mrb[0].mxu0 %v1316
        %v1492 = vpop.f32.mrb[0].mxu0
        %v1493 = vadd.f32 %v1359, %v1492
        %v1494 = vpop.f32.mrb[0].mxu0
        %1495 = vmatprep.mubr.f32.mxu0 %v1319
        %1496 = vmatmul.mubr.f32.gmra.mrb[0].mxu0 %v1318
        %v1497 = vpop.f32.mrb[0].mxu0
        %v1498 = vadd.f32 %v1359, %v1497
        %v1499 = vpop.f32.mrb[0].mxu0
        %1500 = vmatprep.mubr.f32.mxu0 %v1321
        %1501 = vmatmul.mubr.f32.gmra.mrb[0].mxu0 %v1320
        %v1502 = vpop.f32.mrb[0].mxu0
        %v1503 = vadd.f32 %v1359, %v1502
        %v1504 = vpop.f32.mrb[0].mxu0
        %1505 = vdwg.mxu0
        %v1506 = vmul.f32 %v1428, 0.01
        %v1507 = vmul.f32 %v1433, 0.01
        %v1508 = vmul.f32 %v1438, 0.01
        %v1509 = vmul.f32 %v1443, 0.01
        %v1510 = vmul.f32 %v1448, 0.01
        %v1511 = vmul.f32 %v1453, 0.01
        %v1512 = vmul.f32 %v1458, 0.01
        %v1513 = vmul.f32 %v1463, 0.01
        %v1514 = vmul.f32 %v1468, 0.01
        %v1515 = vmul.f32 %v1473, 0.01
        %v1516 = vmul.f32 %v1478, 0.01
        %v1517 = vmul.f32 %v1483, 0.01
        %v1518 = vmul.f32 %v1488, 0.01
        %v1519 = vmul.f32 %v1493, 0.01
        %v1520 = vmul.f32 %v1498, 0.01
        %v1521 = vmul.f32 %v1503, 0.01
        %v1522 = vmax.f32 %v1428, %v1506
        %v1523 = vmax.f32 %v1433, %v1507
        %v1524 = vmax.f32 %v1438, %v1508
        %v1525 = vmax.f32 %v1443, %v1509
        %v1526 = vmax.f32 %v1448, %v1510
        %v1527 = vmax.f32 %v1453, %v1511
        %v1528 = vmax.f32 %v1458, %v1512
        %v1529 = vmax.f32 %v1463, %v1513
        %v1530 = vmax.f32 %v1468, %v1514
        %v1531 = vmax.f32 %v1473, %v1515
        %v1532 = vmax.f32 %v1478, %v1516
        %v1533 = vmax.f32 %v1483, %v1517
        %v1534 = vmax.f32 %v1488, %v1518
        %v1535 = vmax.f32 %v1493, %v1519
        %v1536 = vmax.f32 %v1498, %v1520
        %v1537 = vmax.f32 %v1503, %v1521
        %1538 = vadd.xlane.f32.xlu0 %v1522
        %v1539 = vpop.xlane.xlu0 %1538
        %1540 = vadd.xlane.f32.xlu0 %v1523
        %v1541 = vpop.xlane.xlu0 %1540
        %1542 = vadd.xlane.f32.xlu0 %v1524
        %v1543 = vpop.xlane.xlu0 %1542
        %1544 = vadd.xlane.f32.xlu0 %v1525
        %v1545 = vpop.xlane.xlu0 %1544
        %1546 = vadd.xlane.f32.xlu0 %v1526
        %v1547 = vpop.xlane.xlu0 %1546
        %1548 = vadd.xlane.f32.xlu0 %v1527
        %v1549 = vpop.xlane.xlu0 %1548
        %1550 = vadd.xlane.f32.xlu0 %v1528
        %v1551 = vpop.xlane.xlu0 %1550
        %1552 = vadd.xlane.f32.xlu0 %v1529
        %v1553 = vpop.xlane.xlu0 %1552
        %1554 = vadd.xlane.f32.xlu0 %v1530
        %v1555 = vpop.xlane.xlu0 %1554
        %1556 = vadd.xlane.f32.xlu0 %v1531
        %v1557 = vpop.xlane.xlu0 %1556
        %1558 = vadd.xlane.f32.xlu0 %v1532
        %v1559 = vpop.xlane.xlu0 %1558
        %1560 = vadd.xlane.f32.xlu0 %v1533
        %v1561 = vpop.xlane.xlu0 %1560
        %1562 = vadd.xlane.f32.xlu0 %v1534
        %v1563 = vpop.xlane.xlu0 %1562
        %1564 = vadd.xlane.f32.xlu0 %v1535
        %v1565 = vpop.xlane.xlu0 %1564
        %1566 = vadd.xlane.f32.xlu0 %v1536
        %v1567 = vpop.xlane.xlu0 %1566
        %1568 = vadd.xlane.f32.xlu0 %v1537
        %v1569 = vpop.xlane.xlu0 %1568
        %v1570 = vmul.f32 %v1539, 0.083333336
        %v1571 = vmul.f32 %v1541, 0.083333336
        %v1572 = vmul.f32 %v1543, 0.083333336
        %v1573 = vmul.f32 %v1545, 0.083333336
        %v1574 = vmul.f32 %v1547, 0.083333336
        %v1575 = vmul.f32 %v1549, 0.083333336
        %v1576 = vmul.f32 %v1551, 0.083333336
        %v1577 = vmul.f32 %v1553, 0.083333336
        %v1578 = vmul.f32 %v1555, 0.083333336
        %v1579 = vmul.f32 %v1557, 0.083333336
        %v1580 = vmul.f32 %v1559, 0.083333336
        %v1581 = vmul.f32 %v1561, 0.083333336
        %v1582 = vmul.f32 %v1563, 0.083333336
        %v1583 = vmul.f32 %v1565, 0.083333336
        %v1584 = vmul.f32 %v1567, 0.083333336
        %v1585 = vmul.f32 %v1569, 0.083333336
        %v1586 = vsub.f32 0.0, %v1570
        %v1587 = vsub.f32 0.0, %v1571
        %v1588 = vsub.f32 0.0, %v1572
        %v1589 = vsub.f32 0.0, %v1573
        %v1590 = vsub.f32 0.0, %v1574
        %v1591 = vsub.f32 0.0, %v1575
        %v1592 = vsub.f32 0.0, %v1576
        %v1593 = vsub.f32 0.0, %v1577
        %v1594 = vsub.f32 0.0, %v1578
        %v1595 = vsub.f32 0.0, %v1579
        %v1596 = vsub.f32 0.0, %v1580
        %v1597 = vsub.f32 0.0, %v1581
        %v1598 = vsub.f32 0.0, %v1582
        %v1599 = vsub.f32 0.0, %v1583
        %v1600 = vsub.f32 0.0, %v1584
        %v1601 = vsub.f32 0.0, %v1585
        %v1602 = vmul.f32 %v1586, 1.442695
        %v1603 = vpow.pop %v1602
        %v1604 = vmul.f32 %v1587, 1.442695
        %v1605 = vpow.pop %v1604
        %v1606 = vmul.f32 %v1588, 1.442695
        %v1607 = vpow.pop %v1606
        %v1608 = vmul.f32 %v1589, 1.442695
        %v1609 = vpow.pop %v1608
        %v1610 = vmul.f32 %v1590, 1.442695
        %v1611 = vpow.pop %v1610
        %v1612 = vmul.f32 %v1591, 1.442695
        %v1613 = vpow.pop %v1612
        %v1614 = vmul.f32 %v1592, 1.442695
        %v1615 = vpow.pop %v1614
        %v1616 = vmul.f32 %v1593, 1.442695
        %v1617 = vpow.pop %v1616
        %v1618 = vmul.f32 %v1594, 1.442695
        %v1619 = vpow.pop %v1618
        %v1620 = vmul.f32 %v1595, 1.442695
        %v1621 = vpow.pop %v1620
        %v1622 = vmul.f32 %v1596, 1.442695
        %v1623 = vpow.pop %v1622
        %v1624 = vmul.f32 %v1597, 1.442695
        %v1625 = vpow.pop %v1624
        %v1626 = vmul.f32 %v1598, 1.442695
        %v1627 = vpow.pop %v1626
        %v1628 = vmul.f32 %v1599, 1.442695
        %v1629 = vpow.pop %v1628
        %v1630 = vmul.f32 %v1600, 1.442695
        %v1631 = vpow.pop %v1630
        %v1632 = vmul.f32 %v1601, 1.442695
        %v1633 = vpow.pop %v1632
        %v1634 = vadd.f32 %v1603, 1.0
        %v1635 = vadd.f32 %v1605, 1.0
        %v1636 = vadd.f32 %v1607, 1.0
        %v1637 = vadd.f32 %v1609, 1.0
        %v1638 = vadd.f32 %v1611, 1.0
        %v1639 = vadd.f32 %v1613, 1.0
        %v1640 = vadd.f32 %v1615, 1.0
        %v1641 = vadd.f32 %v1617, 1.0
        %v1642 = vadd.f32 %v1619, 1.0
        %v1643 = vadd.f32 %v1621, 1.0
        %v1644 = vadd.f32 %v1623, 1.0
        %v1645 = vadd.f32 %v1625, 1.0
        %v1646 = vadd.f32 %v1627, 1.0
        %v1647 = vadd.f32 %v1629, 1.0
        %v1648 = vadd.f32 %v1631, 1.0
        %v1649 = vadd.f32 %v1633, 1.0
        %v1650 = vrcp.pop %v1634
        %v1651 = vrcp.pop %v1635
        %v1652 = vrcp.pop %v1636
        %v1653 = vrcp.pop %v1637
        %v1654 = vrcp.pop %v1638
        %v1655 = vrcp.pop %v1639
        %v1656 = vrcp.pop %v1640
        %v1657 = vrcp.pop %v1641
        %v1658 = vrcp.pop %v1642
        %v1659 = vrcp.pop %v1643
        %v1660 = vrcp.pop %v1644
        %v1661 = vrcp.pop %v1645
        %v1662 = vrcp.pop %v1646
        %v1663 = vrcp.pop %v1647
        %v1664 = vrcp.pop %v1648
        %v1665 = vrcp.pop %v1649
        %vm1666 = vcmask 7168
        %1667 = vst.msk [vmem:[%s343] sm:$0xff] %vm1666, %v1650
        %1668 = vst.msk [vmem:[%s343 + $0x8] sm:$0xff] %vm1666, %v1651
        %1669 = vst.msk [vmem:[%s343 + $0x10] sm:$0xff] %vm1666, %v1652
        %1670 = vst.msk [vmem:[%s343 + $0x18] sm:$0xff] %vm1666, %v1653
        %1671 = vst.msk [vmem:[%s343 + $0x20] sm:$0xff] %vm1666, %v1654
        %1672 = vst.msk [vmem:[%s343 + $0x28] sm:$0xff] %vm1666, %v1655
        %1673 = vst.msk [vmem:[%s343 + $0x30] sm:$0xff] %vm1666, %v1656
        %1674 = vst.msk [vmem:[%s343 + $0x38] sm:$0xff] %vm1666, %v1657
        %1675 = vst.msk [vmem:[%s343 + $0x40] sm:$0xff] %vm1666, %v1658
        %1676 = vst.msk [vmem:[%s343 + $0x48] sm:$0xff] %vm1666, %v1659
        %1677 = vst.msk [vmem:[%s343 + $0x50] sm:$0xff] %vm1666, %v1660
        %1678 = vst.msk [vmem:[%s343 + $0x58] sm:$0xff] %vm1666, %v1661
        %1679 = vst.msk [vmem:[%s343 + $0x60] sm:$0xff] %vm1666, %v1662
        %1680 = vst.msk [vmem:[%s343 + $0x68] sm:$0xff] %vm1666, %v1663
        %1681 = vst.msk [vmem:[%s343 + $0x70] sm:$0xff] %vm1666, %v1664
        %1682 = vst.msk [vmem:[%s343 + $0x78] sm:$0xff] %vm1666, %v1665
        %s1683 = smul.u32 16, %s23
        %p1684 = scmp.lt.s32.totalorder %s1683, 63
        %s1685 = scalar_select %p1684, %s1683, 63
        %s1686 = smul.addr %s1685, 8
        %s1687 = scalar_lea.vmem %s7, %s1686
        // Predicated region
        $region65: #{tpu_custom_call.1} parent=47 // pred_check
          %p1688 = pneg %p193
        $region66: #{tpu_custom_call.1} parent=47 // pred_check_branch
          %1690 = sbr.rel (%p1688) target = $region68
        $region67: #{tpu_custom_call.1} parent=47 // pred_region
          %s1691 = smul.u32 16, %s23
        $region68: #{tpu_custom_call.1} parent=47 // pred_fallthru
          _
      $region48: #{tpu_custom_call.1} parent=5 // pred_fallthru
        _
      %p1692 = scmp.le.s32.totalorder 2, %s18
      // Predicated region
      $region69: #{tpu_custom_call.1} parent=5 // pred_check
        %p1693 = pneg %p1692
      $region70: #{tpu_custom_call.1} parent=5 // pred_check_branch
        %1695 = sbr.rel (%p1693) target = $region72
      $region71: #{tpu_custom_call.1} parent=5 // pred_region
        %s1696 = ssub.s32 %s18, 2
        // Predicated region
        $region73: #{tpu_custom_call.1} parent=71 // pred_check
          %p1697 = pneg %p199
        $region74: #{tpu_custom_call.1} parent=71 // pred_check_branch
          %1699 = sbr.rel (%p1697) target = $region76
        $region75: #{tpu_custom_call.1} parent=71 // pred_region
          %s1700 = smul.u32 16, %s24
          %p1701 = scmp.lt.s32.totalorder %s1700, 63
          %s1702 = scalar_select %p1701, %s1700, 63
          %s1703 = smul.addr %s1702, 8
          %s1704 = scalar_lea.vmem %s7, %s1703
        $region76: #{tpu_custom_call.1} parent=71 // pred_fallthru
          _
      $region72: #{tpu_custom_call.1} parent=5 // pred_fallthru
        _
    $region6: #{tpu_custom_call.1} parent=1 // loop_footer
      %s22 = sadd.s32 1, %s18
    $region7: #{tpu_custom_call.1} parent=1 // loop_footer_branch
      %17 = sbr.rel target = $region3
    $region8: #{tpu_custom_call.1} parent=1 // loop_exit
      _
    %1705 = vsyncpa [#allocation3], 1
    %s1706 = scalar_lea.sflag [#allocation3], 1
    %1707 = vsyncpa %s1706, 1
    %1708 = vsyncpa [#allocation5], 1
    %1709 = vsyncpa [#allocation8], 1

</llo_original>
